<compile_context>
chip_gen: v6e
topology: v6e:2x2x1
jax: 0.10.0
libtpu: 0.0.40
codegen_flags: <defaults>
</compile_context>

<pallas_src>
import functools

import jax
import jax.numpy as jnp
from jax.experimental import pallas as pl
from jax.experimental.pallas import tpu as pltpu


def _interp_matrix(n_out: int, n_in: int) -> jnp.ndarray:
    """Row-stochastic bilinear interpolation matrix (PyTorch align_corners=False)."""
    i = jnp.arange(n_out, dtype=jnp.float32)
    src = (i + 0.5) * (n_in / n_out) - 0.5
    src = jnp.clip(src, 0.0, float(n_in - 1))
    i0 = jnp.floor(src).astype(jnp.int32)
    i1 = jnp.minimum(i0 + 1, n_in - 1)
    frac = src - i0.astype(jnp.float32)
    rows = jnp.arange(n_out)
    R = jnp.zeros((n_out, n_in), jnp.float32)
    R = R.at[rows, i0].add(1.0 - frac)
    R = R.at[rows, i1].add(frac)
    return R


def _upsample_kernel(x_ref, w_ref, kw_ref, kh_ref, b_ref, o_ref, *,
                     project_first: bool, cdtype):
    # Per grid step (one batch element):
    #   x_ref:  (C_in,  H*W)     low-res features, flat NCHW lane order
    #   w_ref:  (C_out, C_in)    1x1 conv weight              (resident)
    #   kw_ref: (H*W,   H*Wo)    kron(I_H,  R_w^T) width op   (resident)
    #   kh_ref: (H*Wo,  Ho*Wo)   kron(R_h^T, I_Wo) height op  (resident)
    #   b_ref:  (C_out, 1)       bias (f32)                   (resident)
    #   o_ref:  (C_out, Ho*Wo)   output, flat NCHW lane order (lane-dense store)
    t = x_ref[...].astype(cdtype)

    if project_first:
        # 1x1-conv channel projection on the LOW-RES slab (K = C_in, N = H*W).
        t = jnp.dot(w_ref[...], t,
                    preferred_element_type=jnp.float32).astype(cdtype)

    # Width interpolation: K = H*W (full), N = H*Wo (lane-dense, multiple of 128).
    t = jnp.dot(t, kw_ref[...], preferred_element_type=jnp.float32).astype(cdtype)

    # Height interpolation: K = H*Wo, N = Ho*Wo.  Result rows are already in the
    # final flat (ho*Wo + wo) NCHW element order -> no relayout before the store.
    t = jnp.dot(t, kh_ref[...], preferred_element_type=jnp.float32)

    if not project_first:
        # C_out > C_in: cheaper to interpolate C_in channels and project last.
        t = jnp.dot(w_ref[...], t.astype(cdtype),
                    preferred_element_type=jnp.float32)

    o_ref[...] = (t + b_ref[...]).astype(o_ref.dtype)


def feature_upsample(x, weight, bias, scale: int = 2, mxu_dtype=None):
    """x: (B, C_in, H, W) NCHW. Returns (B, C_out, scale*H, scale*W)."""
    B, C_in, H, W = x.shape
    C_out = weight.shape[0]
    Ho, Wo = scale * H, scale * W
    cdtype = jnp.dtype(mxu_dtype) if mxu_dtype is not None else x.dtype
    project_first = C_out <= C_in          # commute the linear 1x1 conv ahead of interp

    # Separable bilinear operator out[b,c] = R_h @ X[b,c] @ R_w^T, expressed as two
    # right-multiplies on the flat (h*W + w) lane axis so no in-kernel relayout is
    # ever needed and every matmul is full-K / lane-dense:
    #   KW[h*W + w , h*Wo + wo ] = R_w[wo, w]          (width interp)
    #   KH[h*Wo+ wo, ho*Wo + wo'] = R_h[ho, h] * d(wo,wo')   (height interp)
    R_h = _interp_matrix(Ho, H)                                        # (Ho, H)
    R_w = _interp_matrix(Wo, W)                                        # (Wo, W)
    KW = jnp.kron(jnp.eye(H, dtype=jnp.float32), R_w.T).astype(cdtype)   # (H*W,  H*Wo)
    KH = jnp.kron(R_h.T, jnp.eye(Wo, dtype=jnp.float32)).astype(cdtype)  # (H*Wo, Ho*Wo)
    w_c = weight.astype(cdtype)                                          # (C_out, C_in)
    b2 = bias.reshape(C_out, 1).astype(jnp.float32)

    # Free bitcast: flatten the trailing spatial dims of the contiguous NCHW input.
    x_r = x.reshape(B, C_in, H * W)

    kernel = functools.partial(_upsample_kernel,
                               project_first=project_first, cdtype=cdtype)

    out_flat = pl.pallas_call(
        kernel,
        out_shape=jax.ShapeDtypeStruct((B, C_out, Ho * Wo), x.dtype),
        grid_spec=pltpu.PrefetchScalarGridSpec(
            num_scalar_prefetch=0,
            grid=(B,),                                       # pipelined over batch
            in_specs=[
                pl.BlockSpec((None, C_in, H * W), lambda b: (b, 0, 0)),   # x[b]
                pl.BlockSpec((C_out, C_in), lambda b: (0, 0)),            # weight (resident)
                pl.BlockSpec((H * W, H * Wo), lambda b: (0, 0)),          # KW (resident)
                pl.BlockSpec((H * Wo, Ho * Wo), lambda b: (0, 0)),        # KH (resident)
                pl.BlockSpec((C_out, 1), lambda b: (0, 0)),               # bias (resident)
            ],
            out_specs=pl.BlockSpec((None, C_out, Ho * Wo), lambda b: (b, 0, 0)),
        ),
        compiler_params=pltpu.CompilerParams(
            dimension_semantics=("parallel",),               # dual-TC split on v7x
            vmem_limit_bytes=48 * 1024 * 1024,               # ample, < v7x 64 MiB physical
        ),
    )(x_r, w_c, KW, KH, b2)

    # Free: only splits the trailing dim of a row-major contiguous array.
    return out_flat.reshape(B, C_out, Ho, Wo)


if __name__ == "__main__":
    key = jax.random.PRNGKey(0)
    B, C_in, H, W = 2, 16, 16, 16
    C_out = 8          # upsampled_feature_dim (projection to a smaller output dim)
    scale = 2

    k1, k2, k3 = jax.random.split(key, 3)
    x = jax.random.normal(k1, (B, C_in, H, W), dtype=jnp.float32)
    # Deterministic synthetic parameters (1x1 conv projection).
    weight = 0.1 * jax.random.normal(k2, (C_out, C_in), dtype=jnp.float32)
    bias = 0.01 * jax.random.normal(k3, (C_out,), dtype=jnp.float32)

    y = feature_upsample(x, weight, bias, scale=scale)
    jax.block_until_ready(y)
    assert y.shape == (B, C_out, scale * H, scale * W), y.shape

    # Pure-JAX reference (interpolate-then-project, same bilinear operator).
    R_h = _interp_matrix(scale * H, H)
    R_w = _interp_matrix(scale * W, W)
    up_ref = jnp.einsum('oh,bchw,vw->bcov', R_h, x, R_w)
    y_ref = jnp.einsum('kc,bcov->bkov', weight, up_ref) + bias[None, :, None, None]
    err = float(jnp.max(jnp.abs(y - y_ref)))
    assert jnp.allclose(y, y_ref, atol=1e-4, rtol=1e-4), err

    print("KERNEL_OK")
</pallas_src>

<mosaic_0001>
module attributes {stable_mosaic.version = 11 : i64} {
  func.func @_upsample_kernel(%arg0: i32, %arg1: memref<1x16x256xf32, #tpu.memory_space<vmem>>, %arg2: memref<8x16xf32, #tpu.memory_space<vmem>>, %arg3: memref<256x512xf32, #tpu.memory_space<vmem>>, %arg4: memref<512x1024xf32, #tpu.memory_space<vmem>>, %arg5: memref<8x1xf32, #tpu.memory_space<vmem>>, %arg6: memref<1x8x1024xf32, #tpu.memory_space<vmem>>) attributes {dimension_semantics = [#tpu.dimension_semantics<parallel>], iteration_bounds = array<i64: 2>, scalar_prefetch = 0 : i64, scratch_operands = 0 : i64, tpu.core_type = #tpu.core_type<tc>, window_params = [{transform_indices = @transform_0, window_bounds = array<i64: 1, 16, 256>}, {pipeline_mode = #tpu.pipeline_mode<synchronous>, transform_indices = @transform_1, window_bounds = array<i64: 8, 16>}, {pipeline_mode = #tpu.pipeline_mode<synchronous>, transform_indices = @transform_2, window_bounds = array<i64: 256, 512>}, {pipeline_mode = #tpu.pipeline_mode<synchronous>, transform_indices = @transform_3, window_bounds = array<i64: 512, 1024>}, {pipeline_mode = #tpu.pipeline_mode<synchronous>, transform_indices = @transform_4, window_bounds = array<i64: 8, 1>}, {transform_indices = @transform_5, window_bounds = array<i64: 1, 8, 1024>}]} {
    %c0 = arith.constant 0 : index
    %c0_0 = arith.constant 0 : index
    %c0_1 = arith.constant 0 : index
    %0 = vector.load %arg1[%c0, %c0_0, %c0_1] : memref<1x16x256xf32, #tpu.memory_space<vmem>>, vector<1x16x256xf32>
    %1 = vector.shape_cast %0 : vector<1x16x256xf32> to vector<16x256xf32>
    %c0_2 = arith.constant 0 : index
    %c0_3 = arith.constant 0 : index
    %2 = vector.load %arg2[%c0_2, %c0_3] : memref<8x16xf32, #tpu.memory_space<vmem>>, vector<8x16xf32>
    %cst = arith.constant dense<0.000000e+00> : vector<8x256xf32>
    %3 = tpu.matmul %2, %1, %cst {dimension_numbers = #tpu.dot_dimension_numbers<[1], [0], [0], [1], [0, 0, 1, 1], [], []>} : vector<8x16xf32>, vector<16x256xf32>, vector<8x256xf32> -> vector<8x256xf32>
    %c0_4 = arith.constant 0 : index
    %c0_5 = arith.constant 0 : index
    %4 = vector.load %arg3[%c0_4, %c0_5] : memref<256x512xf32, #tpu.memory_space<vmem>>, vector<256x512xf32>
    %cst_6 = arith.constant dense<0.000000e+00> : vector<8x512xf32>
    %5 = tpu.matmul %3, %4, %cst_6 {dimension_numbers = #tpu.dot_dimension_numbers<[1], [0], [0], [1], [0, 0, 1, 1], [], []>} : vector<8x256xf32>, vector<256x512xf32>, vector<8x512xf32> -> vector<8x512xf32>
    %c0_7 = arith.constant 0 : index
    %c0_8 = arith.constant 0 : index
    %6 = vector.load %arg4[%c0_7, %c0_8] : memref<512x1024xf32, #tpu.memory_space<vmem>>, vector<512x1024xf32>
    %cst_9 = arith.constant dense<0.000000e+00> : vector<8x1024xf32>
    %7 = tpu.matmul %5, %6, %cst_9 {dimension_numbers = #tpu.dot_dimension_numbers<[1], [0], [0], [1], [0, 0, 1, 1], [], []>} : vector<8x512xf32>, vector<512x1024xf32>, vector<8x1024xf32> -> vector<8x1024xf32>
    %c0_10 = arith.constant 0 : index
    %c0_11 = arith.constant 0 : index
    %8 = vector.load %arg5[%c0_10, %c0_11] : memref<8x1xf32, #tpu.memory_space<vmem>>, vector<8x1xf32>
    %9 = vector.broadcast %8 : vector<8x1xf32> to vector<8x1024xf32>
    %10 = arith.addf %7, %9 : vector<8x1024xf32>
    %c0_12 = arith.constant 0 : index
    %c0_13 = arith.constant 0 : index
    %c0_14 = arith.constant 0 : index
    %11 = vector.load %arg6[%c0_12, %c0_13, %c0_14] : memref<1x8x1024xf32, #tpu.memory_space<vmem>>, vector<1x8x1024xf32>
    %12 = vector.shape_cast %11 : vector<1x8x1024xf32> to vector<8x1024xf32>
    %13 = vector.shape_cast %10 : vector<8x1024xf32> to vector<1x8x1024xf32>
    tpu.vector_store %arg6[%c0_12, %c0_13, %c0_14], %13 {strides = array<i32>} : memref<1x8x1024xf32, #tpu.memory_space<vmem>>, vector<1x8x1024xf32>,
    return
  }
  func.func @transform_0(%arg0: i32) -> (i32, i32, i32) {
    %c0_i32 = arith.constant 0 : i32
    %c0_i32_0 = arith.constant 0 : i32
    %c0_i32_1 = arith.constant 0 : i32
    return %arg0, %c0_i32, %c0_i32_0 : i32, i32, i32
  }
  func.func @transform_1(%arg0: i32) -> (i32, i32) {
    %c0_i32 = arith.constant 0 : i32
    %c0_i32_0 = arith.constant 0 : i32
    %c0_i32_1 = arith.constant 0 : i32
    return %c0_i32, %c0_i32_0 : i32, i32
  }
  func.func @transform_2(%arg0: i32) -> (i32, i32) {
    %c0_i32 = arith.constant 0 : i32
    %c0_i32_0 = arith.constant 0 : i32
    %c0_i32_1 = arith.constant 0 : i32
    return %c0_i32, %c0_i32_0 : i32, i32
  }
  func.func @transform_3(%arg0: i32) -> (i32, i32) {
    %c0_i32 = arith.constant 0 : i32
    %c0_i32_0 = arith.constant 0 : i32
    %c0_i32_1 = arith.constant 0 : i32
    return %c0_i32, %c0_i32_0 : i32, i32
  }
  func.func @transform_4(%arg0: i32) -> (i32, i32) {
    %c0_i32 = arith.constant 0 : i32
    %c0_i32_0 = arith.constant 0 : i32
    %c0_i32_1 = arith.constant 0 : i32
    return %c0_i32, %c0_i32_0 : i32, i32
  }
  func.func @transform_5(%arg0: i32) -> (i32, i32, i32) {
    %c0_i32 = arith.constant 0 : i32
    %c0_i32_0 = arith.constant 0 : i32
    %c0_i32_1 = arith.constant 0 : i32
    return %arg0, %c0_i32, %c0_i32_0 : i32, i32, i32
  }
}

</mosaic_0001>

<llo_original>
// kernel: tpu_custom_call.1
$region0: #{tpu_custom_call.1}
  #allocation0 [shape = 'u32[]', space=smem, size = 0x4, offset = 0x4, fixed_abs, tag = 'smem constant byte address 0x4 - core index']
  #allocation1 [shape = 'u32[144,128]{1,0:T(1,128)}', space=vmem, size = 0x12000, scoped, tag = 'internal scratch']
  %s0 = inlined_call_operand.hbm [shape: f32[2,16,256], index: 0, kind: input, shape index: {}]
  %s1 = inlined_call_operand.hbm [shape: f32[8,16], index: 1, kind: input, shape index: {}]
  %s2 = inlined_call_operand.hbm [shape: f32[256,512], index: 2, kind: input, shape index: {}]
  %s3 = inlined_call_operand.hbm [shape: f32[512,1024], index: 3, kind: input, shape index: {}]
  %s4 = inlined_call_operand.vmem [shape: f32[8,1], index: 4, kind: input, shape index: {}]
  %s5 = inlined_call_operand.hbm [shape: f32[2,8,1024], index: 5, kind: output, shape index: {}]
  %s6 = sld [smem:[#allocation0]]
  $region69: #{tpu_custom_call.1} parent=0
    _
  %s8 = ssub.s32 1, %s6
  %s9 = scalar_select 0, %s8, %s6
  $region1: #{tpu_custom_call.1} parent=0
    #allocation2 [shape = 'u8[32768]{0}', space=vmem, size = 0x8000, scoped, tag = 'input window, operand 0']
    #allocation3 [shape = 's32[2]{0}', space=sflag, size = 0x8, scoped, tag = 'scoped memory for tpu_custom_call.1']
    #allocation4 [shape = 's32[2]{0}', space=sflag, size = 0x8, scoped, tag = 'scoped memory for tpu_custom_call.1']
    #allocation5 [shape = 'u8[4096]{0}', space=vmem, size = 0x1000, scoped, tag = 'input window, operand 1, single buffered']
    #allocation6 [shape = 's32[1]{0}', space=sflag, size = 0x4, scoped, tag = 'scoped memory for tpu_custom_call.1']
    #allocation7 [shape = 'u8[524288]{0}', space=vmem, size = 0x80000, scoped, tag = 'input window, operand 2, single buffered']
    #allocation8 [shape = 'u8[2097152]{0}', space=vmem, size = 0x200000, scoped, tag = 'input window, operand 3, single buffered']
    #allocation9 [shape = 's32[1]{0}', space=sflag, size = 0x4, scoped, tag = 'scoped memory for tpu_custom_call.1']
    #allocation10 [shape = 'u8[65536]{0}', space=vmem, size = 0x10000, scoped, tag = 'output window, operand 0']
    %10 = vsyncpa [#allocation3], 0
    %s11 = scalar_lea.sflag [#allocation3], 1
    %12 = vsyncpa %s11, 0
    %13 = vsyncpa [#allocation6], 0
    %14 = vsyncpa [#allocation9], 0
    %15 = vsyncpa [#allocation4], 0
    %s16 = scalar_lea.sflag [#allocation4], 1
    %17 = vsyncpa %s16, 0
    loop: start=0, step=1, limit=4
    $region2: #{tpu_custom_call.1} parent=1 // loop_pre_header
      _
    $region3: #{tpu_custom_call.1} parent=1 // loop_header
      %s19 = sphi 0, %s23
      %p20 = scmp.ge.s32.totalorder %s19, 4
      %s29 = sphi 0, %s31
      %s32 = sphi 0, %s29
      %s33 = sphi 0, %s32
      %s49 = sphi 0, %s33
      %s53 = sphi 0, %s53
      %s55 = sphi 0, %s53
      %s56 = sphi 0, %s55
      %s70 = sphi 0, %s56
      %s74 = sphi 0, %s74
      %s76 = sphi 0, %s74
      %s77 = sphi 0, %s76
      %s91 = sphi 0, %s77
      %s95 = sphi 0, %s95
      %s97 = sphi 0, %s95
      %s98 = sphi 0, %s97
      %s112 = sphi 0, %s98
      %s116 = sphi 0, %s116
      %s118 = sphi 0, %s116
      %s119 = sphi 0, %s118
      %s133 = sphi 0, %s119
      %s139 = sphi 0, %s141
      %s142 = sphi 0, %s139
      %s143 = sphi 0, %s142
      %s159 = sphi 0, %s143
    $region4: #{tpu_custom_call.1} parent=1 // loop_header_branch
      %22 = sbr.rel (%p20) target = $region8
    $region5: #{tpu_custom_call.1} parent=1 // loop_body
      %s24 = ssub.s32 %s19, 1
      %s25 = ssub.s32 %s19, 2
      %s26 = sadd.s32 %s19, 1
      %s27 = ssub.s32 %s19, %s26
      %p28 = scmp.eq.s32.totalorder %s27, 0
      %s30 = sadd.s32 %s29, 1
      %s31 = scalar_select %p28, %s29, %s30
      %p34 = pneg %p28
      %p35 = scmp.eq.s32.totalorder %s19, 1
      %p36 = por %p34, %p35
      %p37 = scmp.ne.s32.totalorder %s29, %s32
      %p38 = scmp.eq.s32.totalorder %s19, 0
      %p39 = por %p37, %p38
      %p40 = scmp.ne.s32.totalorder %s29, %s32
      %p41 = scmp.eq.s32.totalorder %s24, 1
      %p42 = por %p40, %p41
      %p43 = scmp.ne.s32.totalorder %s32, %s33
      %p44 = scmp.eq.s32.totalorder %s24, 0
      %p45 = por %p43, %p44
      %p46 = scmp.ne.s32.totalorder %s32, %s33
      %p47 = scmp.eq.s32.totalorder %s25, 1
      %p48 = por %p46, %p47
      %p50 = scmp.ne.s32.totalorder %s33, %s49
      %p51 = scmp.eq.s32.totalorder %s25, 0
      %p52 = por %p50, %p51
      %s54 = sadd.s32 %s53, 1
      %p57 = scmp.eq.s32.totalorder %s19, 1
      %p58 = scmp.ne.s32.totalorder %s53, %s55
      %p59 = scmp.eq.s32.totalorder %s19, 0
      %p60 = por %p58, %p59
      %p61 = scmp.ne.s32.totalorder %s53, %s55
      %p62 = scmp.eq.s32.totalorder %s24, 1
      %p63 = por %p61, %p62
      %p64 = scmp.ne.s32.totalorder %s55, %s56
      %p65 = scmp.eq.s32.totalorder %s24, 0
      %p66 = por %p64, %p65
      %p67 = scmp.ne.s32.totalorder %s55, %s56
      %p68 = scmp.eq.s32.totalorder %s25, 1
      %p69 = por %p67, %p68
      %p71 = scmp.ne.s32.totalorder %s56, %s70
      %p72 = scmp.eq.s32.totalorder %s25, 0
      %p73 = por %p71, %p72
      %s75 = sadd.s32 %s74, 1
      %p78 = scmp.eq.s32.totalorder %s19, 1
      %p79 = scmp.ne.s32.totalorder %s74, %s76
      %p80 = scmp.eq.s32.totalorder %s19, 0
      %p81 = por %p79, %p80
      %p82 = scmp.ne.s32.totalorder %s74, %s76
      %p83 = scmp.eq.s32.totalorder %s24, 1
      %p84 = por %p82, %p83
      %p85 = scmp.ne.s32.totalorder %s76, %s77
      %p86 = scmp.eq.s32.totalorder %s24, 0
      %p87 = por %p85, %p86
      %p88 = scmp.ne.s32.totalorder %s76, %s77
      %p89 = scmp.eq.s32.totalorder %s25, 1
      %p90 = por %p88, %p89
      %p92 = scmp.ne.s32.totalorder %s77, %s91
      %p93 = scmp.eq.s32.totalorder %s25, 0
      %p94 = por %p92, %p93
      %s96 = sadd.s32 %s95, 1
      %p99 = scmp.eq.s32.totalorder %s19, 1
      %p100 = scmp.ne.s32.totalorder %s95, %s97
      %p101 = scmp.eq.s32.totalorder %s19, 0
      %p102 = por %p100, %p101
      %p103 = scmp.ne.s32.totalorder %s95, %s97
      %p104 = scmp.eq.s32.totalorder %s24, 1
      %p105 = por %p103, %p104
      %p106 = scmp.ne.s32.totalorder %s97, %s98
      %p107 = scmp.eq.s32.totalorder %s24, 0
      %p108 = por %p106, %p107
      %p109 = scmp.ne.s32.totalorder %s97, %s98
      %p110 = scmp.eq.s32.totalorder %s25, 1
      %p111 = por %p109, %p110
      %p113 = scmp.ne.s32.totalorder %s98, %s112
      %p114 = scmp.eq.s32.totalorder %s25, 0
      %p115 = por %p113, %p114
      %s117 = sadd.s32 %s116, 1
      %p120 = scmp.eq.s32.totalorder %s19, 1
      %p121 = scmp.ne.s32.totalorder %s116, %s118
      %p122 = scmp.eq.s32.totalorder %s19, 0
      %p123 = por %p121, %p122
      %p124 = scmp.ne.s32.totalorder %s116, %s118
      %p125 = scmp.eq.s32.totalorder %s24, 1
      %p126 = por %p124, %p125
      %p127 = scmp.ne.s32.totalorder %s118, %s119
      %p128 = scmp.eq.s32.totalorder %s24, 0
      %p129 = por %p127, %p128
      %p130 = scmp.ne.s32.totalorder %s118, %s119
      %p131 = scmp.eq.s32.totalorder %s25, 1
      %p132 = por %p130, %p131
      %p134 = scmp.ne.s32.totalorder %s119, %s133
      %p135 = scmp.eq.s32.totalorder %s25, 0
      %p136 = por %p134, %p135
      %s137 = ssub.s32 %s19, %s26
      %p138 = scmp.eq.s32.totalorder %s137, 0
      %s140 = sadd.s32 %s139, 1
      %s141 = scalar_select %p138, %s139, %s140
      %p144 = pneg %p138
      %p145 = scmp.eq.s32.totalorder %s19, 1
      %p146 = por %p144, %p145
      %p147 = scmp.ne.s32.totalorder %s139, %s142
      %p148 = scmp.eq.s32.totalorder %s19, 0
      %p149 = por %p147, %p148
      %p150 = scmp.ne.s32.totalorder %s139, %s142
      %p151 = scmp.eq.s32.totalorder %s24, 1
      %p152 = por %p150, %p151
      %p153 = scmp.ne.s32.totalorder %s142, %s143
      %p154 = scmp.eq.s32.totalorder %s24, 0
      %p155 = por %p153, %p154
      %p156 = scmp.ne.s32.totalorder %s142, %s143
      %p157 = scmp.eq.s32.totalorder %s25, 1
      %p158 = por %p156, %p157
      %p160 = scmp.ne.s32.totalorder %s143, %s159
      %p161 = scmp.eq.s32.totalorder %s25, 0
      %p162 = por %p160, %p161
      %p163 = scmp.le.s32.totalorder 1, %s19
      %p164 = scmp.lt.s32.totalorder %s19, 3
      %p165 = pnand %p163, %p164
      %p166 = pneg %p165
      // Predicated region
      $region9: #{tpu_custom_call.1} parent=5 // pred_check
        _
      $region10: #{tpu_custom_call.1} parent=5 // pred_check_branch
        %168 = sbr.rel (%p165) target = $region12
      $region11: #{tpu_custom_call.1} parent=5 // pred_region
        %s169 = ssub.s32 %s19, 1
        // Predicated region
        $region13: #{tpu_custom_call.1} parent=11 // pred_check
          %p170 = pneg %p66
        $region14: #{tpu_custom_call.1} parent=11 // pred_check_branch
          %172 = sbr.rel (%p170) target = $region16
        $region15: #{tpu_custom_call.1} parent=11 // pred_region
          %s174 = ssub.s32 128, 128
          %175 = vsyncadd [#allocation6], %s174
          %s177 = sshll.u32 [#allocation5], 4
          %s178 = int_to_ptr.vmem [resolvable:$true] %s177
          %180 = dma.hbm_to_vmem [thread:$0]  %s1, 128, %s178, [#allocation6]
        $region16: #{tpu_custom_call.1} parent=11 // pred_fallthru
          _
        // Predicated region
        $region17: #{tpu_custom_call.1} parent=11 // pred_check
          %p181 = pneg %p87
        $region18: #{tpu_custom_call.1} parent=11 // pred_check_branch
          %183 = sbr.rel (%p181) target = $region20
        $region19: #{tpu_custom_call.1} parent=11 // pred_region
          %s185 = ssub.s32 16384, 16384
          %186 = vsyncadd [#allocation6], %s185
          %s187 = sshll.u32 [#allocation7], 4
          %s188 = int_to_ptr.vmem [resolvable:$true] %s187
          %193 = dma.hbm_to_vmem [thread:$0]  %s2, 16384, %s188, [#allocation6], 512, 512, 32
        $region20: #{tpu_custom_call.1} parent=11 // pred_fallthru
          _
        // Predicated region
        $region21: #{tpu_custom_call.1} parent=11 // pred_check
          %p194 = pneg %p108
        $region22: #{tpu_custom_call.1} parent=11 // pred_check_branch
          %196 = sbr.rel (%p194) target = $region24
        $region23: #{tpu_custom_call.1} parent=11 // pred_region
          %s198 = ssub.s32 65536, 65536
          %199 = vsyncadd [#allocation9], %s198
          %s200 = sshll.u32 [#allocation8], 4
          %s201 = int_to_ptr.vmem [resolvable:$true] %s200
          %206 = dma.hbm_to_vmem [thread:$0]  %s3, 65536, %s201, [#allocation9], 1024, 1024, 64
        $region24: #{tpu_custom_call.1} parent=11 // pred_fallthru
          _
        // Predicated region
        $region25: #{tpu_custom_call.1} parent=11 // pred_check
          %p207 = pneg %p129
        $region26: #{tpu_custom_call.1} parent=11 // pred_check_branch
          %209 = sbr.rel (%p207) target = $region28
        $region27: #{tpu_custom_call.1} parent=11 // pred_region
          _
        $region28: #{tpu_custom_call.1} parent=11 // pred_fallthru
          _
      $region12: #{tpu_custom_call.1} parent=5 // pred_fallthru
        _
      %p210 = scmp.lt.s32.totalorder %s19, 2
      // Predicated region
      $region29: #{tpu_custom_call.1} parent=5 // pred_check
        %p211 = pneg %p210
      $region30: #{tpu_custom_call.1} parent=5 // pred_check_branch
        %213 = sbr.rel (%p211) target = $region32
      $region31: #{tpu_custom_call.1} parent=5 // pred_region
        // Predicated region
        $region33: #{tpu_custom_call.1} parent=31 // pred_check
          %p214 = pneg %p39
        $region34: #{tpu_custom_call.1} parent=31 // pred_check_branch
          %216 = sbr.rel (%p214) target = $region36
        $region35: #{tpu_custom_call.1} parent=31 // pred_region
          %s217 = sand.u32 %s29, 1
          %s218 = scalar_lea.sflag [#allocation3], %s217
          %s219 = sand.u32 %s29, 1
          %s220 = smul.addr %s219, 32
          %s221 = scalar_lea.vmem [#allocation2], %s220
          %s223 = ssub.s32 512, 512
          %224 = vsyncadd %s218, %s223
          %s225 = smul.addr %s19, 4
          %s226 = smul.addr %s225, 128
          %s227 = scalar_lea.hbm %s0, %s226
          %s228 = sshll.u32 %s221, 4
          %s229 = int_to_ptr.vmem [resolvable:$true] %s228
          %234 = dma.hbm_to_vmem [thread:$0]  %s227, 512, %s229, %s218, 256, 256, 16
        $region36: #{tpu_custom_call.1} parent=31 // pred_fallthru
          _
      $region32: #{tpu_custom_call.1} parent=5 // pred_fallthru
        _
      %p235 = scmp.le.s32.totalorder 1, %s19
      %p236 = scmp.lt.s32.totalorder %s19, 3
      %p237 = pnand %p235, %p236
      %p238 = pneg %p237
      // Predicated region
      $region37: #{tpu_custom_call.1} parent=5 // pred_check
        _
      $region38: #{tpu_custom_call.1} parent=5 // pred_check_branch
        %240 = sbr.rel (%p237) target = $region40
      $region39: #{tpu_custom_call.1} parent=5 // pred_region
        %s241 = ssub.s32 %s19, 1
        %s242 = sand.u32 %s32, 1
        %s243 = scalar_lea.sflag [#allocation3], %s242
        %s244 = sand.u32 %s32, 1
        %s245 = smul.addr %s244, 32
        %s246 = scalar_lea.vmem [#allocation2], %s245
        // Predicated region
        $region41: #{tpu_custom_call.1} parent=39 // pred_check
          %p247 = pneg %p45
        $region42: #{tpu_custom_call.1} parent=39 // pred_check_branch
          %249 = sbr.rel (%p247) target = $region44
        $region43: #{tpu_custom_call.1} parent=39 // pred_region
          %250 = dma.done %s243, 512
        $region44: #{tpu_custom_call.1} parent=39 // pred_fallthru
          _
        // Predicated region
        $region45: #{tpu_custom_call.1} parent=39 // pred_check
          %p251 = pneg %p66
        $region46: #{tpu_custom_call.1} parent=39 // pred_check_branch
          %253 = sbr.rel (%p251) target = $region48
        $region47: #{tpu_custom_call.1} parent=39 // pred_region
          %254 = dma.done [#allocation6], 128
        $region48: #{tpu_custom_call.1} parent=39 // pred_fallthru
          _
        // Predicated region
        $region49: #{tpu_custom_call.1} parent=39 // pred_check
          %p255 = pneg %p87
        $region50: #{tpu_custom_call.1} parent=39 // pred_check_branch
          %257 = sbr.rel (%p255) target = $region52
        $region51: #{tpu_custom_call.1} parent=39 // pred_region
          %258 = dma.done [#allocation6], 16384
        $region52: #{tpu_custom_call.1} parent=39 // pred_fallthru
          _
        // Predicated region
        $region53: #{tpu_custom_call.1} parent=39 // pred_check
          %p259 = pneg %p108
        $region54: #{tpu_custom_call.1} parent=39 // pred_check_branch
          %261 = sbr.rel (%p259) target = $region56
        $region55: #{tpu_custom_call.1} parent=39 // pred_region
          %262 = dma.done [#allocation9], 65536
        $region56: #{tpu_custom_call.1} parent=39 // pred_fallthru
          _
        %s263 = sand.u32 %s32, 1
        %s264 = scalar_lea.sflag [#allocation3], %s263
        %s265 = sand.u32 %s32, 1
        %s266 = smul.addr %s265, 32
        %s267 = scalar_lea.vmem [#allocation2], %s266
        %p268 = pneg %p45
        %p269 = pneg %p42
        %p270 = pneg %p66
        %p271 = pneg %p63
        %p272 = pneg %p87
        %p273 = pneg %p84
        %p274 = pneg %p108
        %p275 = pneg %p105
        %p276 = pneg %p129
        %p277 = pneg %p126
        %p278 = pneg %p155
        %p279 = pneg %p152
        %s280 = sand.u32 %s142, 1
        %s281 = scalar_lea.sflag [#allocation4], %s280
        %s282 = sand.u32 %s142, 1
        %s283 = smul.addr %s282, 64
        %s284 = scalar_lea.vmem [#allocation10], %s283
        %v285 = vld [vmem:[%s246] sm:$0xff]
        %v286 = vld [vmem:[%s246 + $0x8] sm:$0xff]
        %v287 = vld [vmem:[%s246 + $0x10] sm:$0xff]
        %v288 = vld [vmem:[%s246 + $0x18] sm:$0xff]
        %v289 = vld [vmem:[#allocation5] sm:$0xff]
        %vm290 = vcmask 130048
        %v292 = vsel %vm290, %v289, 0
        %294 = vmatprep.subr.mxu0 0.0
        %295 = vmatpush1.msra.mxu0 0.0
        %296 = vmatprep.subr.mxu0 0.0
        %297 = vmatpush1.msra.mxu0 0.0
        %298 = vmatprep.subr.mxu0 0.0
        %299 = vmatpush1.msra.mxu0 0.0
        %300 = vmatprep.subr.mxu0 0.0
        %301 = vmatpush1.msra.mxu0 0.0
        %302 = vmatprep.subr.mxu0 0.0
        %303 = vmatpush1.msra.mxu0 0.0
        %304 = vmatprep.subr.mxu0 0.0
        %305 = vmatpush1.msra.mxu0 0.0
        %306 = vmatprep.subr.mxu0 0.0
        %307 = vmatpush1.msra.mxu0 0.0
        %308 = vmatprep.subr.mxu0 0.0
        %309 = vmatpush1.msra.mxu0 0.0
        %310 = vmatprep.subr.mxu0 0.0
        %311 = vmatpush1.msra.mxu0 0.0
        %312 = vmatprep.subr.mxu0 0.0
        %313 = vmatpush1.msra.mxu0 0.0
        %314 = vmatprep.subr.mxu0 0.0
        %315 = vmatpush1.msra.mxu0 0.0
        %316 = vmatprep.subr.mxu0 0.0
        %317 = vmatpush1.msra.mxu0 0.0
        %318 = vmatprep.subr.mxu0 0.0
        %319 = vmatpush1.msra.mxu0 0.0
        %320 = vmatprep.subr.mxu0 0.0
        %321 = vmatpush1.msra.mxu0 0.0
        %322 = vmatprep.subr.mxu0 %v288
        %323 = vmatpush1.msra.mxu0 %v287
        %324 = vmatprep.subr.mxu0 %v286
        %325 = vmatpush1.msra.mxu0 %v285
        %326 = vmatprep.subr.mxu0 0.0
        %327 = vmatpush2.msra.mxu0 0.0
        %328 = vmatprep.subr.mxu0 0.0
        %329 = vmatpush2.msra.mxu0 0.0
        %330 = vmatprep.subr.mxu0 0.0
        %331 = vmatpush2.msra.mxu0 0.0
        %332 = vmatprep.subr.mxu0 0.0
        %333 = vmatpush2.msra.mxu0 0.0
        %334 = vmatprep.subr.mxu0 0.0
        %335 = vmatpush2.msra.mxu0 0.0
        %336 = vmatprep.subr.mxu0 0.0
        %337 = vmatpush2.msra.mxu0 0.0
        %338 = vmatprep.subr.mxu0 0.0
        %339 = vmatpush2.msra.mxu0 0.0
        %340 = vmatprep.subr.mxu0 0.0
        %341 = vmatpush2.msra.mxu0 0.0
        %342 = vmatprep.subr.mxu0 0.0
        %343 = vmatpush2.msra.mxu0 0.0
        %344 = vmatprep.subr.mxu0 0.0
        %345 = vmatpush2.msra.mxu0 0.0
        %346 = vmatprep.subr.mxu0 0.0
        %347 = vmatpush2.msra.mxu0 0.0
        %348 = vmatprep.subr.mxu0 0.0
        %349 = vmatpush2.msra.mxu0 0.0
        %350 = vmatprep.subr.mxu0 0.0
        %351 = vmatpush2.msra.mxu0 0.0
        %352 = vmatprep.subr.mxu0 0.0
        %353 = vmatpush2.msra.mxu0 0.0
        %354 = vmatprep.subr.mxu0 0.0
        %355 = vmatpush2.msra.mxu0 0.0
        %356 = vmatprep.subr.mxu0 0.0
        %357 = vmatpush2.msra.mxu0 0.0
        %358 = vmatprep.mubr.f32.mxu0 0.0
        %359 = vmatmul.mubr.f32.gmra.mxu0 %v292
        %v360 = vpop.f32.mrf.mxu0
        %v361 = vadd.f32 0.0, %v360
        %v362 = vpop.f32.mrf.mxu0
        %v363 = vadd.f32 0.0, %v362
        %364 = vdwg.mxu0
        %v365 = vld [vmem:[#allocation7] sm:$0xff]
        %v366 = vld [vmem:[#allocation7 + $0x8] sm:$0xff]
        %v367 = vld [vmem:[#allocation7 + $0x10] sm:$0xff]
        %v368 = vld [vmem:[#allocation7 + $0x18] sm:$0xff]
        %v369 = vld [vmem:[#allocation7 + $0x20] sm:$0xff]
        %v370 = vld [vmem:[#allocation7 + $0x28] sm:$0xff]
        %v371 = vld [vmem:[#allocation7 + $0x30] sm:$0xff]
        %v372 = vld [vmem:[#allocation7 + $0x38] sm:$0xff]
        %v373 = vld [vmem:[#allocation7 + $0x40] sm:$0xff]
        %v374 = vld [vmem:[#allocation7 + $0x48] sm:$0xff]
        %v375 = vld [vmem:[#allocation7 + $0x50] sm:$0xff]
        %v376 = vld [vmem:[#allocation7 + $0x58] sm:$0xff]
        %v377 = vld [vmem:[#allocation7 + $0x60] sm:$0xff]
        %v378 = vld [vmem:[#allocation7 + $0x68] sm:$0xff]
        %v379 = vld [vmem:[#allocation7 + $0x70] sm:$0xff]
        %v380 = vld [vmem:[#allocation7 + $0x78] sm:$0xff]
        %v381 = vld [vmem:[#allocation7 + $0x80] sm:$0xff]
        %v382 = vld [vmem:[#allocation7 + $0x88] sm:$0xff]
        %v383 = vld [vmem:[#allocation7 + $0x90] sm:$0xff]
        %v384 = vld [vmem:[#allocation7 + $0x98] sm:$0xff]
        %v385 = vld [vmem:[#allocation7 + $0xa0] sm:$0xff]
        %v386 = vld [vmem:[#allocation7 + $0xa8] sm:$0xff]
        %v387 = vld [vmem:[#allocation7 + $0xb0] sm:$0xff]
        %v388 = vld [vmem:[#allocation7 + $0xb8] sm:$0xff]
        %v389 = vld [vmem:[#allocation7 + $0xc0] sm:$0xff]
        %v390 = vld [vmem:[#allocation7 + $0xc8] sm:$0xff]
        %v391 = vld [vmem:[#allocation7 + $0xd0] sm:$0xff]
        %v392 = vld [vmem:[#allocation7 + $0xd8] sm:$0xff]
        %v393 = vld [vmem:[#allocation7 + $0xe0] sm:$0xff]
        %v394 = vld [vmem:[#allocation7 + $0xe8] sm:$0xff]
        %v395 = vld [vmem:[#allocation7 + $0xf0] sm:$0xff]
        %v396 = vld [vmem:[#allocation7 + $0xf8] sm:$0xff]
        %v397 = vld [vmem:[#allocation7 + $0x100] sm:$0xff]
        %v398 = vld [vmem:[#allocation7 + $0x108] sm:$0xff]
        %v399 = vld [vmem:[#allocation7 + $0x110] sm:$0xff]
        %v400 = vld [vmem:[#allocation7 + $0x118] sm:$0xff]
        %v401 = vld [vmem:[#allocation7 + $0x120] sm:$0xff]
        %v402 = vld [vmem:[#allocation7 + $0x128] sm:$0xff]
        %v403 = vld [vmem:[#allocation7 + $0x130] sm:$0xff]
        %v404 = vld [vmem:[#allocation7 + $0x138] sm:$0xff]
        %v405 = vld [vmem:[#allocation7 + $0x140] sm:$0xff]
        %v406 = vld [vmem:[#allocation7 + $0x148] sm:$0xff]
        %v407 = vld [vmem:[#allocation7 + $0x150] sm:$0xff]
        %v408 = vld [vmem:[#allocation7 + $0x158] sm:$0xff]
        %v409 = vld [vmem:[#allocation7 + $0x160] sm:$0xff]
        %v410 = vld [vmem:[#allocation7 + $0x168] sm:$0xff]
        %v411 = vld [vmem:[#allocation7 + $0x170] sm:$0xff]
        %v412 = vld [vmem:[#allocation7 + $0x178] sm:$0xff]
        %v413 = vld [vmem:[#allocation7 + $0x180] sm:$0xff]
        %v414 = vld [vmem:[#allocation7 + $0x188] sm:$0xff]
        %v415 = vld [vmem:[#allocation7 + $0x190] sm:$0xff]
        %v416 = vld [vmem:[#allocation7 + $0x198] sm:$0xff]
        %v417 = vld [vmem:[#allocation7 + $0x1a0] sm:$0xff]
        %v418 = vld [vmem:[#allocation7 + $0x1a8] sm:$0xff]
        %v419 = vld [vmem:[#allocation7 + $0x1b0] sm:$0xff]
        %v420 = vld [vmem:[#allocation7 + $0x1b8] sm:$0xff]
        %v421 = vld [vmem:[#allocation7 + $0x1c0] sm:$0xff]
        %v422 = vld [vmem:[#allocation7 + $0x1c8] sm:$0xff]
        %v423 = vld [vmem:[#allocation7 + $0x1d0] sm:$0xff]
        %v424 = vld [vmem:[#allocation7 + $0x1d8] sm:$0xff]
        %v425 = vld [vmem:[#allocation7 + $0x1e0] sm:$0xff]
        %v426 = vld [vmem:[#allocation7 + $0x1e8] sm:$0xff]
        %v427 = vld [vmem:[#allocation7 + $0x1f0] sm:$0xff]
        %v428 = vld [vmem:[#allocation7 + $0x1f8] sm:$0xff]
        %v429 = vld [vmem:[#allocation7 + $0x200] sm:$0xff]
        %v430 = vld [vmem:[#allocation7 + $0x208] sm:$0xff]
        %v431 = vld [vmem:[#allocation7 + $0x210] sm:$0xff]
        %v432 = vld [vmem:[#allocation7 + $0x218] sm:$0xff]
        %v433 = vld [vmem:[#allocation7 + $0x220] sm:$0xff]
        %v434 = vld [vmem:[#allocation7 + $0x228] sm:$0xff]
        %v435 = vld [vmem:[#allocation7 + $0x230] sm:$0xff]
        %v436 = vld [vmem:[#allocation7 + $0x238] sm:$0xff]
        %v437 = vld [vmem:[#allocation7 + $0x240] sm:$0xff]
        %v438 = vld [vmem:[#allocation7 + $0x248] sm:$0xff]
        %v439 = vld [vmem:[#allocation7 + $0x250] sm:$0xff]
        %v440 = vld [vmem:[#allocation7 + $0x258] sm:$0xff]
        %v441 = vld [vmem:[#allocation7 + $0x260] sm:$0xff]
        %v442 = vld [vmem:[#allocation7 + $0x268] sm:$0xff]
        %v443 = vld [vmem:[#allocation7 + $0x270] sm:$0xff]
        %v444 = vld [vmem:[#allocation7 + $0x278] sm:$0xff]
        %v445 = vld [vmem:[#allocation7 + $0x280] sm:$0xff]
        %v446 = vld [vmem:[#allocation7 + $0x288] sm:$0xff]
        %v447 = vld [vmem:[#allocation7 + $0x290] sm:$0xff]
        %v448 = vld [vmem:[#allocation7 + $0x298] sm:$0xff]
        %v449 = vld [vmem:[#allocation7 + $0x2a0] sm:$0xff]
        %v450 = vld [vmem:[#allocation7 + $0x2a8] sm:$0xff]
        %v451 = vld [vmem:[#allocation7 + $0x2b0] sm:$0xff]
        %v452 = vld [vmem:[#allocation7 + $0x2b8] sm:$0xff]
        %v453 = vld [vmem:[#allocation7 + $0x2c0] sm:$0xff]
        %v454 = vld [vmem:[#allocation7 + $0x2c8] sm:$0xff]
        %v455 = vld [vmem:[#allocation7 + $0x2d0] sm:$0xff]
        %v456 = vld [vmem:[#allocation7 + $0x2d8] sm:$0xff]
        %v457 = vld [vmem:[#allocation7 + $0x2e0] sm:$0xff]
        %v458 = vld [vmem:[#allocation7 + $0x2e8] sm:$0xff]
        %v459 = vld [vmem:[#allocation7 + $0x2f0] sm:$0xff]
        %v460 = vld [vmem:[#allocation7 + $0x2f8] sm:$0xff]
        %v461 = vld [vmem:[#allocation7 + $0x300] sm:$0xff]
        %v462 = vld [vmem:[#allocation7 + $0x308] sm:$0xff]
        %v463 = vld [vmem:[#allocation7 + $0x310] sm:$0xff]
        %v464 = vld [vmem:[#allocation7 + $0x318] sm:$0xff]
        %v465 = vld [vmem:[#allocation7 + $0x320] sm:$0xff]
        %v466 = vld [vmem:[#allocation7 + $0x328] sm:$0xff]
        %v467 = vld [vmem:[#allocation7 + $0x330] sm:$0xff]
        %v468 = vld [vmem:[#allocation7 + $0x338] sm:$0xff]
        %v469 = vld [vmem:[#allocation7 + $0x340] sm:$0xff]
        %v470 = vld [vmem:[#allocation7 + $0x348] sm:$0xff]
        %v471 = vld [vmem:[#allocation7 + $0x350] sm:$0xff]
        %v472 = vld [vmem:[#allocation7 + $0x358] sm:$0xff]
        %v473 = vld [vmem:[#allocation7 + $0x360] sm:$0xff]
        %v474 = vld [vmem:[#allocation7 + $0x368] sm:$0xff]
        %v475 = vld [vmem:[#allocation7 + $0x370] sm:$0xff]
        %v476 = vld [vmem:[#allocation7 + $0x378] sm:$0xff]
        %v477 = vld [vmem:[#allocation7 + $0x380] sm:$0xff]
        %v478 = vld [vmem:[#allocation7 + $0x388] sm:$0xff]
        %v479 = vld [vmem:[#allocation7 + $0x390] sm:$0xff]
        %v480 = vld [vmem:[#allocation7 + $0x398] sm:$0xff]
        %v481 = vld [vmem:[#allocation7 + $0x3a0] sm:$0xff]
        %v482 = vld [vmem:[#allocation7 + $0x3a8] sm:$0xff]
        %v483 = vld [vmem:[#allocation7 + $0x3b0] sm:$0xff]
        %v484 = vld [vmem:[#allocation7 + $0x3b8] sm:$0xff]
        %v485 = vld [vmem:[#allocation7 + $0x3c0] sm:$0xff]
        %v486 = vld [vmem:[#allocation7 + $0x3c8] sm:$0xff]
        %v487 = vld [vmem:[#allocation7 + $0x3d0] sm:$0xff]
        %v488 = vld [vmem:[#allocation7 + $0x3d8] sm:$0xff]
        %v489 = vld [vmem:[#allocation7 + $0x3e0] sm:$0xff]
        %v490 = vld [vmem:[#allocation7 + $0x3e8] sm:$0xff]
        %v491 = vld [vmem:[#allocation7 + $0x3f0] sm:$0xff]
        %v492 = vld [vmem:[#allocation7 + $0x3f8] sm:$0xff]
        %493 = vmatprep.subr.mxu0 %v426
        %494 = vmatpush1.msra.mxu0 %v425
        %495 = vmatprep.subr.mxu0 %v422
        %496 = vmatpush1.msra.mxu0 %v421
        %497 = vmatprep.subr.mxu0 %v418
        %498 = vmatpush1.msra.mxu0 %v417
        %499 = vmatprep.subr.mxu0 %v414
        %500 = vmatpush1.msra.mxu0 %v413
        %501 = vmatprep.subr.mxu0 %v410
        %502 = vmatpush1.msra.mxu0 %v409
        %503 = vmatprep.subr.mxu0 %v406
        %504 = vmatpush1.msra.mxu0 %v405
        %505 = vmatprep.subr.mxu0 %v402
        %506 = vmatpush1.msra.mxu0 %v401
        %507 = vmatprep.subr.mxu0 %v398
        %508 = vmatpush1.msra.mxu0 %v397
        %509 = vmatprep.subr.mxu0 %v394
        %510 = vmatpush1.msra.mxu0 %v393
        %511 = vmatprep.subr.mxu0 %v390
        %512 = vmatpush1.msra.mxu0 %v389
        %513 = vmatprep.subr.mxu0 %v386
        %514 = vmatpush1.msra.mxu0 %v385
        %515 = vmatprep.subr.mxu0 %v382
        %516 = vmatpush1.msra.mxu0 %v381
        %517 = vmatprep.subr.mxu0 %v378
        %518 = vmatpush1.msra.mxu0 %v377
        %519 = vmatprep.subr.mxu0 %v374
        %520 = vmatpush1.msra.mxu0 %v373
        %521 = vmatprep.subr.mxu0 %v370
        %522 = vmatpush1.msra.mxu0 %v369
        %523 = vmatprep.subr.mxu0 %v366
        %524 = vmatpush1.msra.mxu0 %v365
        %525 = vmatprep.subr.mxu0 %v490
        %526 = vmatpush2.msra.mxu0 %v489
        %527 = vmatprep.subr.mxu0 %v486
        %528 = vmatpush2.msra.mxu0 %v485
        %529 = vmatprep.subr.mxu0 %v482
        %530 = vmatpush2.msra.mxu0 %v481
        %531 = vmatprep.subr.mxu0 %v478
        %532 = vmatpush2.msra.mxu0 %v477
        %533 = vmatprep.subr.mxu0 %v474
        %534 = vmatpush2.msra.mxu0 %v473
        %535 = vmatprep.subr.mxu0 %v470
        %536 = vmatpush2.msra.mxu0 %v469
        %537 = vmatprep.subr.mxu0 %v466
        %538 = vmatpush2.msra.mxu0 %v465
        %539 = vmatprep.subr.mxu0 %v462
        %540 = vmatpush2.msra.mxu0 %v461
        %541 = vmatprep.subr.mxu0 %v458
        %542 = vmatpush2.msra.mxu0 %v457
        %543 = vmatprep.subr.mxu0 %v454
        %544 = vmatpush2.msra.mxu0 %v453
        %545 = vmatprep.subr.mxu0 %v450
        %546 = vmatpush2.msra.mxu0 %v449
        %547 = vmatprep.subr.mxu0 %v446
        %548 = vmatpush2.msra.mxu0 %v445
        %549 = vmatprep.subr.mxu0 %v442
        %550 = vmatpush2.msra.mxu0 %v441
        %551 = vmatprep.subr.mxu0 %v438
        %552 = vmatpush2.msra.mxu0 %v437
        %553 = vmatprep.subr.mxu0 %v434
        %554 = vmatpush2.msra.mxu0 %v433
        %555 = vmatprep.subr.mxu0 %v430
        %556 = vmatpush2.msra.mxu0 %v429
        %557 = vmatprep.mubr.f32.mxu0 %v363
        %558 = vmatmul.mubr.f32.gmra.mxu0 %v361
        %v559 = vpop.f32.mrf.mxu0
        %v560 = vadd.f32 0.0, %v559
        %v561 = vpop.f32.mrf.mxu0
        %v562 = vadd.f32 0.0, %v561
        %563 = vdwg.mxu0
        %564 = vmatprep.subr.mxu0 %v428
        %565 = vmatpush1.msra.mxu0 %v427
        %566 = vmatprep.subr.mxu0 %v424
        %567 = vmatpush1.msra.mxu0 %v423
        %568 = vmatprep.subr.mxu0 %v420
        %569 = vmatpush1.msra.mxu0 %v419
        %570 = vmatprep.subr.mxu0 %v416
        %571 = vmatpush1.msra.mxu0 %v415
        %572 = vmatprep.subr.mxu0 %v412
        %573 = vmatpush1.msra.mxu0 %v411
        %574 = vmatprep.subr.mxu0 %v408
        %575 = vmatpush1.msra.mxu0 %v407
        %576 = vmatprep.subr.mxu0 %v404
        %577 = vmatpush1.msra.mxu0 %v403
        %578 = vmatprep.subr.mxu0 %v400
        %579 = vmatpush1.msra.mxu0 %v399
        %580 = vmatprep.subr.mxu0 %v396
        %581 = vmatpush1.msra.mxu0 %v395
        %582 = vmatprep.subr.mxu0 %v392
        %583 = vmatpush1.msra.mxu0 %v391
        %584 = vmatprep.subr.mxu0 %v388
        %585 = vmatpush1.msra.mxu0 %v387
        %586 = vmatprep.subr.mxu0 %v384
        %587 = vmatpush1.msra.mxu0 %v383
        %588 = vmatprep.subr.mxu0 %v380
        %589 = vmatpush1.msra.mxu0 %v379
        %590 = vmatprep.subr.mxu0 %v376
        %591 = vmatpush1.msra.mxu0 %v375
        %592 = vmatprep.subr.mxu0 %v372
        %593 = vmatpush1.msra.mxu0 %v371
        %594 = vmatprep.subr.mxu0 %v368
        %595 = vmatpush1.msra.mxu0 %v367
        %596 = vmatprep.subr.mxu0 %v492
        %597 = vmatpush2.msra.mxu0 %v491
        %598 = vmatprep.subr.mxu0 %v488
        %599 = vmatpush2.msra.mxu0 %v487
        %600 = vmatprep.subr.mxu0 %v484
        %601 = vmatpush2.msra.mxu0 %v483
        %602 = vmatprep.subr.mxu0 %v480
        %603 = vmatpush2.msra.mxu0 %v479
        %604 = vmatprep.subr.mxu0 %v476
        %605 = vmatpush2.msra.mxu0 %v475
        %606 = vmatprep.subr.mxu0 %v472
        %607 = vmatpush2.msra.mxu0 %v471
        %608 = vmatprep.subr.mxu0 %v468
        %609 = vmatpush2.msra.mxu0 %v467
        %610 = vmatprep.subr.mxu0 %v464
        %611 = vmatpush2.msra.mxu0 %v463
        %612 = vmatprep.subr.mxu0 %v460
        %613 = vmatpush2.msra.mxu0 %v459
        %614 = vmatprep.subr.mxu0 %v456
        %615 = vmatpush2.msra.mxu0 %v455
        %616 = vmatprep.subr.mxu0 %v452
        %617 = vmatpush2.msra.mxu0 %v451
        %618 = vmatprep.subr.mxu0 %v448
        %619 = vmatpush2.msra.mxu0 %v447
        %620 = vmatprep.subr.mxu0 %v444
        %621 = vmatpush2.msra.mxu0 %v443
        %622 = vmatprep.subr.mxu0 %v440
        %623 = vmatpush2.msra.mxu0 %v439
        %624 = vmatprep.subr.mxu0 %v436
        %625 = vmatpush2.msra.mxu0 %v435
        %626 = vmatprep.subr.mxu0 %v432
        %627 = vmatpush2.msra.mxu0 %v431
        %628 = vmatprep.mubr.f32.mxu0 %v363
        %629 = vmatmul.mubr.f32.gmra.mxu0 %v361
        %v630 = vpop.f32.mrf.mxu0
        %v631 = vadd.f32 0.0, %v630
        %v632 = vpop.f32.mrf.mxu0
        %v633 = vadd.f32 0.0, %v632
        %634 = vdwg.mxu0
        %v635 = vld [vmem:[#allocation8] sm:$0xff]
        %v636 = vld [vmem:[#allocation8 + $0x8] sm:$0xff]
        %v637 = vld [vmem:[#allocation8 + $0x10] sm:$0xff]
        %v638 = vld [vmem:[#allocation8 + $0x18] sm:$0xff]
        %v639 = vld [vmem:[#allocation8 + $0x20] sm:$0xff]
        %v640 = vld [vmem:[#allocation8 + $0x28] sm:$0xff]
        %v641 = vld [vmem:[#allocation8 + $0x30] sm:$0xff]
        %v642 = vld [vmem:[#allocation8 + $0x38] sm:$0xff]
        %v643 = vld [vmem:[#allocation8 + $0x40] sm:$0xff]
        %v644 = vld [vmem:[#allocation8 + $0x48] sm:$0xff]
        %v645 = vld [vmem:[#allocation8 + $0x50] sm:$0xff]
        %v646 = vld [vmem:[#allocation8 + $0x58] sm:$0xff]
        %v647 = vld [vmem:[#allocation8 + $0x60] sm:$0xff]
        %v648 = vld [vmem:[#allocation8 + $0x68] sm:$0xff]
        %v649 = vld [vmem:[#allocation8 + $0x70] sm:$0xff]
        %v650 = vld [vmem:[#allocation8 + $0x78] sm:$0xff]
        %v651 = vld [vmem:[#allocation8 + $0x80] sm:$0xff]
        %v652 = vld [vmem:[#allocation8 + $0x88] sm:$0xff]
        %v653 = vld [vmem:[#allocation8 + $0x90] sm:$0xff]
        %v654 = vld [vmem:[#allocation8 + $0x98] sm:$0xff]
        %v655 = vld [vmem:[#allocation8 + $0xa0] sm:$0xff]
        %v656 = vld [vmem:[#allocation8 + $0xa8] sm:$0xff]
        %v657 = vld [vmem:[#allocation8 + $0xb0] sm:$0xff]
        %v658 = vld [vmem:[#allocation8 + $0xb8] sm:$0xff]
        %v659 = vld [vmem:[#allocation8 + $0xc0] sm:$0xff]
        %v660 = vld [vmem:[#allocation8 + $0xc8] sm:$0xff]
        %v661 = vld [vmem:[#allocation8 + $0xd0] sm:$0xff]
        %v662 = vld [vmem:[#allocation8 + $0xd8] sm:$0xff]
        %v663 = vld [vmem:[#allocation8 + $0xe0] sm:$0xff]
        %v664 = vld [vmem:[#allocation8 + $0xe8] sm:$0xff]
        %v665 = vld [vmem:[#allocation8 + $0xf0] sm:$0xff]
        %v666 = vld [vmem:[#allocation8 + $0xf8] sm:$0xff]
        %v667 = vld [vmem:[#allocation8 + $0x100] sm:$0xff]
        %v668 = vld [vmem:[#allocation8 + $0x108] sm:$0xff]
        %v669 = vld [vmem:[#allocation8 + $0x110] sm:$0xff]
        %v670 = vld [vmem:[#allocation8 + $0x118] sm:$0xff]
        %v671 = vld [vmem:[#allocation8 + $0x120] sm:$0xff]
        %v672 = vld [vmem:[#allocation8 + $0x128] sm:$0xff]
        %v673 = vld [vmem:[#allocation8 + $0x130] sm:$0xff]
        %v674 = vld [vmem:[#allocation8 + $0x138] sm:$0xff]
        %v675 = vld [vmem:[#allocation8 + $0x140] sm:$0xff]
        %v676 = vld [vmem:[#allocation8 + $0x148] sm:$0xff]
        %v677 = vld [vmem:[#allocation8 + $0x150] sm:$0xff]
        %v678 = vld [vmem:[#allocation8 + $0x158] sm:$0xff]
        %v679 = vld [vmem:[#allocation8 + $0x160] sm:$0xff]
        %v680 = vld [vmem:[#allocation8 + $0x168] sm:$0xff]
        %v681 = vld [vmem:[#allocation8 + $0x170] sm:$0xff]
        %v682 = vld [vmem:[#allocation8 + $0x178] sm:$0xff]
        %v683 = vld [vmem:[#allocation8 + $0x180] sm:$0xff]
        %v684 = vld [vmem:[#allocation8 + $0x188] sm:$0xff]
        %v685 = vld [vmem:[#allocation8 + $0x190] sm:$0xff]
        %v686 = vld [vmem:[#allocation8 + $0x198] sm:$0xff]
        %v687 = vld [vmem:[#allocation8 + $0x1a0] sm:$0xff]
        %v688 = vld [vmem:[#allocation8 + $0x1a8] sm:$0xff]
        %v689 = vld [vmem:[#allocation8 + $0x1b0] sm:$0xff]
        %v690 = vld [vmem:[#allocation8 + $0x1b8] sm:$0xff]
        %v691 = vld [vmem:[#allocation8 + $0x1c0] sm:$0xff]
        %v692 = vld [vmem:[#allocation8 + $0x1c8] sm:$0xff]
        %v693 = vld [vmem:[#allocation8 + $0x1d0] sm:$0xff]
        %v694 = vld [vmem:[#allocation8 + $0x1d8] sm:$0xff]
        %v695 = vld [vmem:[#allocation8 + $0x1e0] sm:$0xff]
        %v696 = vld [vmem:[#allocation8 + $0x1e8] sm:$0xff]
        %v697 = vld [vmem:[#allocation8 + $0x1f0] sm:$0xff]
        %v698 = vld [vmem:[#allocation8 + $0x1f8] sm:$0xff]
        %v699 = vld [vmem:[#allocation8 + $0x200] sm:$0xff]
        %v700 = vld [vmem:[#allocation8 + $0x208] sm:$0xff]
        %v701 = vld [vmem:[#allocation8 + $0x210] sm:$0xff]
        %v702 = vld [vmem:[#allocation8 + $0x218] sm:$0xff]
        %v703 = vld [vmem:[#allocation8 + $0x220] sm:$0xff]
        %v704 = vld [vmem:[#allocation8 + $0x228] sm:$0xff]
        %v705 = vld [vmem:[#allocation8 + $0x230] sm:$0xff]
        %v706 = vld [vmem:[#allocation8 + $0x238] sm:$0xff]
        %v707 = vld [vmem:[#allocation8 + $0x240] sm:$0xff]
        %v708 = vld [vmem:[#allocation8 + $0x248] sm:$0xff]
        %v709 = vld [vmem:[#allocation8 + $0x250] sm:$0xff]
        %v710 = vld [vmem:[#allocation8 + $0x258] sm:$0xff]
        %v711 = vld [vmem:[#allocation8 + $0x260] sm:$0xff]
        %v712 = vld [vmem:[#allocation8 + $0x268] sm:$0xff]
        %v713 = vld [vmem:[#allocation8 + $0x270] sm:$0xff]
        %v714 = vld [vmem:[#allocation8 + $0x278] sm:$0xff]
        %v715 = vld [vmem:[#allocation8 + $0x280] sm:$0xff]
        %v716 = vld [vmem:[#allocation8 + $0x288] sm:$0xff]
        %v717 = vld [vmem:[#allocation8 + $0x290] sm:$0xff]
        %v718 = vld [vmem:[#allocation8 + $0x298] sm:$0xff]
        %v719 = vld [vmem:[#allocation8 + $0x2a0] sm:$0xff]
        %v720 = vld [vmem:[#allocation8 + $0x2a8] sm:$0xff]
        %v721 = vld [vmem:[#allocation8 + $0x2b0] sm:$0xff]
        %v722 = vld [vmem:[#allocation8 + $0x2b8] sm:$0xff]
        %v723 = vld [vmem:[#allocation8 + $0x2c0] sm:$0xff]
        %v724 = vld [vmem:[#allocation8 + $0x2c8] sm:$0xff]
        %v725 = vld [vmem:[#allocation8 + $0x2d0] sm:$0xff]
        %v726 = vld [vmem:[#allocation8 + $0x2d8] sm:$0xff]
        %v727 = vld [vmem:[#allocation8 + $0x2e0] sm:$0xff]
        %v728 = vld [vmem:[#allocation8 + $0x2e8] sm:$0xff]
        %v729 = vld [vmem:[#allocation8 + $0x2f0] sm:$0xff]
        %v730 = vld [vmem:[#allocation8 + $0x2f8] sm:$0xff]
        %v731 = vld [vmem:[#allocation8 + $0x300] sm:$0xff]
        %v732 = vld [vmem:[#allocation8 + $0x308] sm:$0xff]
        %v733 = vld [vmem:[#allocation8 + $0x310] sm:$0xff]
        %v734 = vld [vmem:[#allocation8 + $0x318] sm:$0xff]
        %v735 = vld [vmem:[#allocation8 + $0x320] sm:$0xff]
        %v736 = vld [vmem:[#allocation8 + $0x328] sm:$0xff]
        %v737 = vld [vmem:[#allocation8 + $0x330] sm:$0xff]
        %v738 = vld [vmem:[#allocation8 + $0x338] sm:$0xff]
        %v739 = vld [vmem:[#allocation8 + $0x340] sm:$0xff]
        %v740 = vld [vmem:[#allocation8 + $0x348] sm:$0xff]
        %v741 = vld [vmem:[#allocation8 + $0x350] sm:$0xff]
        %v742 = vld [vmem:[#allocation8 + $0x358] sm:$0xff]
        %v743 = vld [vmem:[#allocation8 + $0x360] sm:$0xff]
        %v744 = vld [vmem:[#allocation8 + $0x368] sm:$0xff]
        %v745 = vld [vmem:[#allocation8 + $0x370] sm:$0xff]
        %v746 = vld [vmem:[#allocation8 + $0x378] sm:$0xff]
        %v747 = vld [vmem:[#allocation8 + $0x380] sm:$0xff]
        %v748 = vld [vmem:[#allocation8 + $0x388] sm:$0xff]
        %v749 = vld [vmem:[#allocation8 + $0x390] sm:$0xff]
        %v750 = vld [vmem:[#allocation8 + $0x398] sm:$0xff]
        %v751 = vld [vmem:[#allocation8 + $0x3a0] sm:$0xff]
        %v752 = vld [vmem:[#allocation8 + $0x3a8] sm:$0xff]
        %v753 = vld [vmem:[#allocation8 + $0x3b0] sm:$0xff]
        %v754 = vld [vmem:[#allocation8 + $0x3b8] sm:$0xff]
        %v755 = vld [vmem:[#allocation8 + $0x3c0] sm:$0xff]
        %v756 = vld [vmem:[#allocation8 + $0x3c8] sm:$0xff]
        %v757 = vld [vmem:[#allocation8 + $0x3d0] sm:$0xff]
        %v758 = vld [vmem:[#allocation8 + $0x3d8] sm:$0xff]
        %v759 = vld [vmem:[#allocation8 + $0x3e0] sm:$0xff]
        %v760 = vld [vmem:[#allocation8 + $0x3e8] sm:$0xff]
        %v761 = vld [vmem:[#allocation8 + $0x3f0] sm:$0xff]
        %v762 = vld [vmem:[#allocation8 + $0x3f8] sm:$0xff]
        %v763 = vld [vmem:[#allocation8 + $0x400] sm:$0xff]
        %v764 = vld [vmem:[#allocation8 + $0x408] sm:$0xff]
        %v765 = vld [vmem:[#allocation8 + $0x410] sm:$0xff]
        %v766 = vld [vmem:[#allocation8 + $0x418] sm:$0xff]
        %v767 = vld [vmem:[#allocation8 + $0x420] sm:$0xff]
        %v768 = vld [vmem:[#allocation8 + $0x428] sm:$0xff]
        %v769 = vld [vmem:[#allocation8 + $0x430] sm:$0xff]
        %v770 = vld [vmem:[#allocation8 + $0x438] sm:$0xff]
        %v771 = vld [vmem:[#allocation8 + $0x440] sm:$0xff]
        %v772 = vld [vmem:[#allocation8 + $0x448] sm:$0xff]
        %v773 = vld [vmem:[#allocation8 + $0x450] sm:$0xff]
        %v774 = vld [vmem:[#allocation8 + $0x458] sm:$0xff]
        %v775 = vld [vmem:[#allocation8 + $0x460] sm:$0xff]
        %v776 = vld [vmem:[#allocation8 + $0x468] sm:$0xff]
        %v777 = vld [vmem:[#allocation8 + $0x470] sm:$0xff]
        %v778 = vld [vmem:[#allocation8 + $0x478] sm:$0xff]
        %v779 = vld [vmem:[#allocation8 + $0x480] sm:$0xff]
        %v780 = vld [vmem:[#allocation8 + $0x488] sm:$0xff]
        %v781 = vld [vmem:[#allocation8 + $0x490] sm:$0xff]
        %v782 = vld [vmem:[#allocation8 + $0x498] sm:$0xff]
        %v783 = vld [vmem:[#allocation8 + $0x4a0] sm:$0xff]
        %v784 = vld [vmem:[#allocation8 + $0x4a8] sm:$0xff]
        %v785 = vld [vmem:[#allocation8 + $0x4b0] sm:$0xff]
        %v786 = vld [vmem:[#allocation8 + $0x4b8] sm:$0xff]
        %v787 = vld [vmem:[#allocation8 + $0x4c0] sm:$0xff]
        %v788 = vld [vmem:[#allocation8 + $0x4c8] sm:$0xff]
        %v789 = vld [vmem:[#allocation8 + $0x4d0] sm:$0xff]
        %v790 = vld [vmem:[#allocation8 + $0x4d8] sm:$0xff]
        %v791 = vld [vmem:[#allocation8 + $0x4e0] sm:$0xff]
        %v792 = vld [vmem:[#allocation8 + $0x4e8] sm:$0xff]
        %v793 = vld [vmem:[#allocation8 + $0x4f0] sm:$0xff]
        %v794 = vld [vmem:[#allocation8 + $0x4f8] sm:$0xff]
        %v795 = vld [vmem:[#allocation8 + $0x500] sm:$0xff]
        %v796 = vld [vmem:[#allocation8 + $0x508] sm:$0xff]
        %v797 = vld [vmem:[#allocation8 + $0x510] sm:$0xff]
        %v798 = vld [vmem:[#allocation8 + $0x518] sm:$0xff]
        %v799 = vld [vmem:[#allocation8 + $0x520] sm:$0xff]
        %v800 = vld [vmem:[#allocation8 + $0x528] sm:$0xff]
        %v801 = vld [vmem:[#allocation8 + $0x530] sm:$0xff]
        %v802 = vld [vmem:[#allocation8 + $0x538] sm:$0xff]
        %v803 = vld [vmem:[#allocation8 + $0x540] sm:$0xff]
        %v804 = vld [vmem:[#allocation8 + $0x548] sm:$0xff]
        %v805 = vld [vmem:[#allocation8 + $0x550] sm:$0xff]
        %v806 = vld [vmem:[#allocation8 + $0x558] sm:$0xff]
        %v807 = vld [vmem:[#allocation8 + $0x560] sm:$0xff]
        %v808 = vld [vmem:[#allocation8 + $0x568] sm:$0xff]
        %v809 = vld [vmem:[#allocation8 + $0x570] sm:$0xff]
        %v810 = vld [vmem:[#allocation8 + $0x578] sm:$0xff]
        %v811 = vld [vmem:[#allocation8 + $0x580] sm:$0xff]
        %v812 = vld [vmem:[#allocation8 + $0x588] sm:$0xff]
        %v813 = vld [vmem:[#allocation8 + $0x590] sm:$0xff]
        %v814 = vld [vmem:[#allocation8 + $0x598] sm:$0xff]
        %v815 = vld [vmem:[#allocation8 + $0x5a0] sm:$0xff]
        %v816 = vld [vmem:[#allocation8 + $0x5a8] sm:$0xff]
        %v817 = vld [vmem:[#allocation8 + $0x5b0] sm:$0xff]
        %v818 = vld [vmem:[#allocation8 + $0x5b8] sm:$0xff]
        %v819 = vld [vmem:[#allocation8 + $0x5c0] sm:$0xff]
        %v820 = vld [vmem:[#allocation8 + $0x5c8] sm:$0xff]
        %v821 = vld [vmem:[#allocation8 + $0x5d0] sm:$0xff]
        %v822 = vld [vmem:[#allocation8 + $0x5d8] sm:$0xff]
        %v823 = vld [vmem:[#allocation8 + $0x5e0] sm:$0xff]
        %v824 = vld [vmem:[#allocation8 + $0x5e8] sm:$0xff]
        %v825 = vld [vmem:[#allocation8 + $0x5f0] sm:$0xff]
        %v826 = vld [vmem:[#allocation8 + $0x5f8] sm:$0xff]
        %v827 = vld [vmem:[#allocation8 + $0x600] sm:$0xff]
        %v828 = vld [vmem:[#allocation8 + $0x608] sm:$0xff]
        %v829 = vld [vmem:[#allocation8 + $0x610] sm:$0xff]
        %v830 = vld [vmem:[#allocation8 + $0x618] sm:$0xff]
        %v831 = vld [vmem:[#allocation8 + $0x620] sm:$0xff]
        %v832 = vld [vmem:[#allocation8 + $0x628] sm:$0xff]
        %v833 = vld [vmem:[#allocation8 + $0x630] sm:$0xff]
        %v834 = vld [vmem:[#allocation8 + $0x638] sm:$0xff]
        %v835 = vld [vmem:[#allocation8 + $0x640] sm:$0xff]
        %v836 = vld [vmem:[#allocation8 + $0x648] sm:$0xff]
        %v837 = vld [vmem:[#allocation8 + $0x650] sm:$0xff]
        %v838 = vld [vmem:[#allocation8 + $0x658] sm:$0xff]
        %v839 = vld [vmem:[#allocation8 + $0x660] sm:$0xff]
        %v840 = vld [vmem:[#allocation8 + $0x668] sm:$0xff]
        %v841 = vld [vmem:[#allocation8 + $0x670] sm:$0xff]
        %v842 = vld [vmem:[#allocation8 + $0x678] sm:$0xff]
        %v843 = vld [vmem:[#allocation8 + $0x680] sm:$0xff]
        %v844 = vld [vmem:[#allocation8 + $0x688] sm:$0xff]
        %v845 = vld [vmem:[#allocation8 + $0x690] sm:$0xff]
        %v846 = vld [vmem:[#allocation8 + $0x698] sm:$0xff]
        %v847 = vld [vmem:[#allocation8 + $0x6a0] sm:$0xff]
        %v848 = vld [vmem:[#allocation8 + $0x6a8] sm:$0xff]
        %v849 = vld [vmem:[#allocation8 + $0x6b0] sm:$0xff]
        %v850 = vld [vmem:[#allocation8 + $0x6b8] sm:$0xff]
        %v851 = vld [vmem:[#allocation8 + $0x6c0] sm:$0xff]
        %v852 = vld [vmem:[#allocation8 + $0x6c8] sm:$0xff]
        %v853 = vld [vmem:[#allocation8 + $0x6d0] sm:$0xff]
        %v854 = vld [vmem:[#allocation8 + $0x6d8] sm:$0xff]
        %v855 = vld [vmem:[#allocation8 + $0x6e0] sm:$0xff]
        %v856 = vld [vmem:[#allocation8 + $0x6e8] sm:$0xff]
        %v857 = vld [vmem:[#allocation8 + $0x6f0] sm:$0xff]
        %v858 = vld [vmem:[#allocation8 + $0x6f8] sm:$0xff]
        %v859 = vld [vmem:[#allocation8 + $0x700] sm:$0xff]
        %v860 = vld [vmem:[#allocation8 + $0x708] sm:$0xff]
        %v861 = vld [vmem:[#allocation8 + $0x710] sm:$0xff]
        %v862 = vld [vmem:[#allocation8 + $0x718] sm:$0xff]
        %v863 = vld [vmem:[#allocation8 + $0x720] sm:$0xff]
        %v864 = vld [vmem:[#allocation8 + $0x728] sm:$0xff]
        %v865 = vld [vmem:[#allocation8 + $0x730] sm:$0xff]
        %v866 = vld [vmem:[#allocation8 + $0x738] sm:$0xff]
        %v867 = vld [vmem:[#allocation8 + $0x740] sm:$0xff]
        %v868 = vld [vmem:[#allocation8 + $0x748] sm:$0xff]
        %v869 = vld [vmem:[#allocation8 + $0x750] sm:$0xff]
        %v870 = vld [vmem:[#allocation8 + $0x758] sm:$0xff]
        %v871 = vld [vmem:[#allocation8 + $0x760] sm:$0xff]
        %v872 = vld [vmem:[#allocation8 + $0x768] sm:$0xff]
        %v873 = vld [vmem:[#allocation8 + $0x770] sm:$0xff]
        %v874 = vld [vmem:[#allocation8 + $0x778] sm:$0xff]
        %v875 = vld [vmem:[#allocation8 + $0x780] sm:$0xff]
        %v876 = vld [vmem:[#allocation8 + $0x788] sm:$0xff]
        %v877 = vld [vmem:[#allocation8 + $0x790] sm:$0xff]
        %v878 = vld [vmem:[#allocation8 + $0x798] sm:$0xff]
        %v879 = vld [vmem:[#allocation8 + $0x7a0] sm:$0xff]
        %v880 = vld [vmem:[#allocation8 + $0x7a8] sm:$0xff]
        %v881 = vld [vmem:[#allocation8 + $0x7b0] sm:$0xff]
        %v882 = vld [vmem:[#allocation8 + $0x7b8] sm:$0xff]
        %v883 = vld [vmem:[#allocation8 + $0x7c0] sm:$0xff]
        %v884 = vld [vmem:[#allocation8 + $0x7c8] sm:$0xff]
        %v885 = vld [vmem:[#allocation8 + $0x7d0] sm:$0xff]
        %v886 = vld [vmem:[#allocation8 + $0x7d8] sm:$0xff]
        %v887 = vld [vmem:[#allocation8 + $0x7e0] sm:$0xff]
        %v888 = vld [vmem:[#allocation8 + $0x7e8] sm:$0xff]
        %v889 = vld [vmem:[#allocation8 + $0x7f0] sm:$0xff]
        %v890 = vld [vmem:[#allocation8 + $0x7f8] sm:$0xff]
        %v891 = vld [vmem:[#allocation8 + $0x800] sm:$0xff]
        %v892 = vld [vmem:[#allocation8 + $0x808] sm:$0xff]
        %v893 = vld [vmem:[#allocation8 + $0x810] sm:$0xff]
        %v894 = vld [vmem:[#allocation8 + $0x818] sm:$0xff]
        %v895 = vld [vmem:[#allocation8 + $0x820] sm:$0xff]
        %v896 = vld [vmem:[#allocation8 + $0x828] sm:$0xff]
        %v897 = vld [vmem:[#allocation8 + $0x830] sm:$0xff]
        %v898 = vld [vmem:[#allocation8 + $0x838] sm:$0xff]
        %v899 = vld [vmem:[#allocation8 + $0x840] sm:$0xff]
        %v900 = vld [vmem:[#allocation8 + $0x848] sm:$0xff]
        %v901 = vld [vmem:[#allocation8 + $0x850] sm:$0xff]
        %v902 = vld [vmem:[#allocation8 + $0x858] sm:$0xff]
        %v903 = vld [vmem:[#allocation8 + $0x860] sm:$0xff]
        %v904 = vld [vmem:[#allocation8 + $0x868] sm:$0xff]
        %v905 = vld [vmem:[#allocation8 + $0x870] sm:$0xff]
        %v906 = vld [vmem:[#allocation8 + $0x878] sm:$0xff]
        %v907 = vld [vmem:[#allocation8 + $0x880] sm:$0xff]
        %v908 = vld [vmem:[#allocation8 + $0x888] sm:$0xff]
        %v909 = vld [vmem:[#allocation8 + $0x890] sm:$0xff]
        %v910 = vld [vmem:[#allocation8 + $0x898] sm:$0xff]
        %v911 = vld [vmem:[#allocation8 + $0x8a0] sm:$0xff]
        %v912 = vld [vmem:[#allocation8 + $0x8a8] sm:$0xff]
        %v913 = vld [vmem:[#allocation8 + $0x8b0] sm:$0xff]
        %v914 = vld [vmem:[#allocation8 + $0x8b8] sm:$0xff]
        %v915 = vld [vmem:[#allocation8 + $0x8c0] sm:$0xff]
        %v916 = vld [vmem:[#allocation8 + $0x8c8] sm:$0xff]
        %v917 = vld [vmem:[#allocation8 + $0x8d0] sm:$0xff]
        %v918 = vld [vmem:[#allocation8 + $0x8d8] sm:$0xff]
        %v919 = vld [vmem:[#allocation8 + $0x8e0] sm:$0xff]
        %v920 = vld [vmem:[#allocation8 + $0x8e8] sm:$0xff]
        %v921 = vld [vmem:[#allocation8 + $0x8f0] sm:$0xff]
        %v922 = vld [vmem:[#allocation8 + $0x8f8] sm:$0xff]
        %v923 = vld [vmem:[#allocation8 + $0x900] sm:$0xff]
        %v924 = vld [vmem:[#allocation8 + $0x908] sm:$0xff]
        %v925 = vld [vmem:[#allocation8 + $0x910] sm:$0xff]
        %v926 = vld [vmem:[#allocation8 + $0x918] sm:$0xff]
        %v927 = vld [vmem:[#allocation8 + $0x920] sm:$0xff]
        %v928 = vld [vmem:[#allocation8 + $0x928] sm:$0xff]
        %v929 = vld [vmem:[#allocation8 + $0x930] sm:$0xff]
        %v930 = vld [vmem:[#allocation8 + $0x938] sm:$0xff]
        %v931 = vld [vmem:[#allocation8 + $0x940] sm:$0xff]
        %v932 = vld [vmem:[#allocation8 + $0x948] sm:$0xff]
        %v933 = vld [vmem:[#allocation8 + $0x950] sm:$0xff]
        %v934 = vld [vmem:[#allocation8 + $0x958] sm:$0xff]
        %v935 = vld [vmem:[#allocation8 + $0x960] sm:$0xff]
        %v936 = vld [vmem:[#allocation8 + $0x968] sm:$0xff]
        %v937 = vld [vmem:[#allocation8 + $0x970] sm:$0xff]
        %v938 = vld [vmem:[#allocation8 + $0x978] sm:$0xff]
        %v939 = vld [vmem:[#allocation8 + $0x980] sm:$0xff]
        %v940 = vld [vmem:[#allocation8 + $0x988] sm:$0xff]
        %v941 = vld [vmem:[#allocation8 + $0x990] sm:$0xff]
        %v942 = vld [vmem:[#allocation8 + $0x998] sm:$0xff]
        %v943 = vld [vmem:[#allocation8 + $0x9a0] sm:$0xff]
        %v944 = vld [vmem:[#allocation8 + $0x9a8] sm:$0xff]
        %v945 = vld [vmem:[#allocation8 + $0x9b0] sm:$0xff]
        %v946 = vld [vmem:[#allocation8 + $0x9b8] sm:$0xff]
        %v947 = vld [vmem:[#allocation8 + $0x9c0] sm:$0xff]
        %v948 = vld [vmem:[#allocation8 + $0x9c8] sm:$0xff]
        %v949 = vld [vmem:[#allocation8 + $0x9d0] sm:$0xff]
        %v950 = vld [vmem:[#allocation8 + $0x9d8] sm:$0xff]
        %v951 = vld [vmem:[#allocation8 + $0x9e0] sm:$0xff]
        %v952 = vld [vmem:[#allocation8 + $0x9e8] sm:$0xff]
        %v953 = vld [vmem:[#allocation8 + $0x9f0] sm:$0xff]
        %v954 = vld [vmem:[#allocation8 + $0x9f8] sm:$0xff]
        %v955 = vld [vmem:[#allocation8 + $0xa00] sm:$0xff]
        %v956 = vld [vmem:[#allocation8 + $0xa08] sm:$0xff]
        %v957 = vld [vmem:[#allocation8 + $0xa10] sm:$0xff]
        %v958 = vld [vmem:[#allocation8 + $0xa18] sm:$0xff]
        %v959 = vld [vmem:[#allocation8 + $0xa20] sm:$0xff]
        %v960 = vld [vmem:[#allocation8 + $0xa28] sm:$0xff]
        %v961 = vld [vmem:[#allocation8 + $0xa30] sm:$0xff]
        %v962 = vld [vmem:[#allocation8 + $0xa38] sm:$0xff]
        %v963 = vld [vmem:[#allocation8 + $0xa40] sm:$0xff]
        %v964 = vld [vmem:[#allocation8 + $0xa48] sm:$0xff]
        %v965 = vld [vmem:[#allocation8 + $0xa50] sm:$0xff]
        %v966 = vld [vmem:[#allocation8 + $0xa58] sm:$0xff]
        %v967 = vld [vmem:[#allocation8 + $0xa60] sm:$0xff]
        %v968 = vld [vmem:[#allocation8 + $0xa68] sm:$0xff]
        %v969 = vld [vmem:[#allocation8 + $0xa70] sm:$0xff]
        %v970 = vld [vmem:[#allocation8 + $0xa78] sm:$0xff]
        %v971 = vld [vmem:[#allocation8 + $0xa80] sm:$0xff]
        %v972 = vld [vmem:[#allocation8 + $0xa88] sm:$0xff]
        %v973 = vld [vmem:[#allocation8 + $0xa90] sm:$0xff]
        %v974 = vld [vmem:[#allocation8 + $0xa98] sm:$0xff]
        %v975 = vld [vmem:[#allocation8 + $0xaa0] sm:$0xff]
        %v976 = vld [vmem:[#allocation8 + $0xaa8] sm:$0xff]
        %v977 = vld [vmem:[#allocation8 + $0xab0] sm:$0xff]
        %v978 = vld [vmem:[#allocation8 + $0xab8] sm:$0xff]
        %v979 = vld [vmem:[#allocation8 + $0xac0] sm:$0xff]
        %v980 = vld [vmem:[#allocation8 + $0xac8] sm:$0xff]
        %v981 = vld [vmem:[#allocation8 + $0xad0] sm:$0xff]
        %v982 = vld [vmem:[#allocation8 + $0xad8] sm:$0xff]
        %v983 = vld [vmem:[#allocation8 + $0xae0] sm:$0xff]
        %v984 = vld [vmem:[#allocation8 + $0xae8] sm:$0xff]
        %v985 = vld [vmem:[#allocation8 + $0xaf0] sm:$0xff]
        %v986 = vld [vmem:[#allocation8 + $0xaf8] sm:$0xff]
        %v987 = vld [vmem:[#allocation8 + $0xb00] sm:$0xff]
        %v988 = vld [vmem:[#allocation8 + $0xb08] sm:$0xff]
        %v989 = vld [vmem:[#allocation8 + $0xb10] sm:$0xff]
        %v990 = vld [vmem:[#allocation8 + $0xb18] sm:$0xff]
        %v991 = vld [vmem:[#allocation8 + $0xb20] sm:$0xff]
        %v992 = vld [vmem:[#allocation8 + $0xb28] sm:$0xff]
        %v993 = vld [vmem:[#allocation8 + $0xb30] sm:$0xff]
        %v994 = vld [vmem:[#allocation8 + $0xb38] sm:$0xff]
        %v995 = vld [vmem:[#allocation8 + $0xb40] sm:$0xff]
        %v996 = vld [vmem:[#allocation8 + $0xb48] sm:$0xff]
        %v997 = vld [vmem:[#allocation8 + $0xb50] sm:$0xff]
        %v998 = vld [vmem:[#allocation8 + $0xb58] sm:$0xff]
        %v999 = vld [vmem:[#allocation8 + $0xb60] sm:$0xff]
        %v1000 = vld [vmem:[#allocation8 + $0xb68] sm:$0xff]
        %v1001 = vld [vmem:[#allocation8 + $0xb70] sm:$0xff]
        %v1002 = vld [vmem:[#allocation8 + $0xb78] sm:$0xff]
        %v1003 = vld [vmem:[#allocation8 + $0xb80] sm:$0xff]
        %v1004 = vld [vmem:[#allocation8 + $0xb88] sm:$0xff]
        %v1005 = vld [vmem:[#allocation8 + $0xb90] sm:$0xff]
        %v1006 = vld [vmem:[#allocation8 + $0xb98] sm:$0xff]
        %v1007 = vld [vmem:[#allocation8 + $0xba0] sm:$0xff]
        %v1008 = vld [vmem:[#allocation8 + $0xba8] sm:$0xff]
        %v1009 = vld [vmem:[#allocation8 + $0xbb0] sm:$0xff]
        %v1010 = vld [vmem:[#allocation8 + $0xbb8] sm:$0xff]
        %v1011 = vld [vmem:[#allocation8 + $0xbc0] sm:$0xff]
        %v1012 = vld [vmem:[#allocation8 + $0xbc8] sm:$0xff]
        %v1013 = vld [vmem:[#allocation8 + $0xbd0] sm:$0xff]
        %v1014 = vld [vmem:[#allocation8 + $0xbd8] sm:$0xff]
        %v1015 = vld [vmem:[#allocation8 + $0xbe0] sm:$0xff]
        %v1016 = vld [vmem:[#allocation8 + $0xbe8] sm:$0xff]
        %v1017 = vld [vmem:[#allocation8 + $0xbf0] sm:$0xff]
        %v1018 = vld [vmem:[#allocation8 + $0xbf8] sm:$0xff]
        %v1019 = vld [vmem:[#allocation8 + $0xc00] sm:$0xff]
        %v1020 = vld [vmem:[#allocation8 + $0xc08] sm:$0xff]
        %v1021 = vld [vmem:[#allocation8 + $0xc10] sm:$0xff]
        %v1022 = vld [vmem:[#allocation8 + $0xc18] sm:$0xff]
        %v1023 = vld [vmem:[#allocation8 + $0xc20] sm:$0xff]
        %v1024 = vld [vmem:[#allocation8 + $0xc28] sm:$0xff]
        %v1025 = vld [vmem:[#allocation8 + $0xc30] sm:$0xff]
        %v1026 = vld [vmem:[#allocation8 + $0xc38] sm:$0xff]
        %v1027 = vld [vmem:[#allocation8 + $0xc40] sm:$0xff]
        %v1028 = vld [vmem:[#allocation8 + $0xc48] sm:$0xff]
        %v1029 = vld [vmem:[#allocation8 + $0xc50] sm:$0xff]
        %v1030 = vld [vmem:[#allocation8 + $0xc58] sm:$0xff]
        %v1031 = vld [vmem:[#allocation8 + $0xc60] sm:$0xff]
        %v1032 = vld [vmem:[#allocation8 + $0xc68] sm:$0xff]
        %v1033 = vld [vmem:[#allocation8 + $0xc70] sm:$0xff]
        %v1034 = vld [vmem:[#allocation8 + $0xc78] sm:$0xff]
        %v1035 = vld [vmem:[#allocation8 + $0xc80] sm:$0xff]
        %v1036 = vld [vmem:[#allocation8 + $0xc88] sm:$0xff]
        %v1037 = vld [vmem:[#allocation8 + $0xc90] sm:$0xff]
        %v1038 = vld [vmem:[#allocation8 + $0xc98] sm:$0xff]
        %v1039 = vld [vmem:[#allocation8 + $0xca0] sm:$0xff]
        %v1040 = vld [vmem:[#allocation8 + $0xca8] sm:$0xff]
        %v1041 = vld [vmem:[#allocation8 + $0xcb0] sm:$0xff]
        %v1042 = vld [vmem:[#allocation8 + $0xcb8] sm:$0xff]
        %v1043 = vld [vmem:[#allocation8 + $0xcc0] sm:$0xff]
        %v1044 = vld [vmem:[#allocation8 + $0xcc8] sm:$0xff]
        %v1045 = vld [vmem:[#allocation8 + $0xcd0] sm:$0xff]
        %v1046 = vld [vmem:[#allocation8 + $0xcd8] sm:$0xff]
        %v1047 = vld [vmem:[#allocation8 + $0xce0] sm:$0xff]
        %v1048 = vld [vmem:[#allocation8 + $0xce8] sm:$0xff]
        %v1049 = vld [vmem:[#allocation8 + $0xcf0] sm:$0xff]
        %v1050 = vld [vmem:[#allocation8 + $0xcf8] sm:$0xff]
        %v1051 = vld [vmem:[#allocation8 + $0xd00] sm:$0xff]
        %v1052 = vld [vmem:[#allocation8 + $0xd08] sm:$0xff]
        %v1053 = vld [vmem:[#allocation8 + $0xd10] sm:$0xff]
        %v1054 = vld [vmem:[#allocation8 + $0xd18] sm:$0xff]
        %v1055 = vld [vmem:[#allocation8 + $0xd20] sm:$0xff]
        %v1056 = vld [vmem:[#allocation8 + $0xd28] sm:$0xff]
        %v1057 = vld [vmem:[#allocation8 + $0xd30] sm:$0xff]
        %v1058 = vld [vmem:[#allocation8 + $0xd38] sm:$0xff]
        %v1059 = vld [vmem:[#allocation8 + $0xd40] sm:$0xff]
        %v1060 = vld [vmem:[#allocation8 + $0xd48] sm:$0xff]
        %v1061 = vld [vmem:[#allocation8 + $0xd50] sm:$0xff]
        %v1062 = vld [vmem:[#allocation8 + $0xd58] sm:$0xff]
        %v1063 = vld [vmem:[#allocation8 + $0xd60] sm:$0xff]
        %v1064 = vld [vmem:[#allocation8 + $0xd68] sm:$0xff]
        %v1065 = vld [vmem:[#allocation8 + $0xd70] sm:$0xff]
        %v1066 = vld [vmem:[#allocation8 + $0xd78] sm:$0xff]
        %v1067 = vld [vmem:[#allocation8 + $0xd80] sm:$0xff]
        %v1068 = vld [vmem:[#allocation8 + $0xd88] sm:$0xff]
        %v1069 = vld [vmem:[#allocation8 + $0xd90] sm:$0xff]
        %v1070 = vld [vmem:[#allocation8 + $0xd98] sm:$0xff]
        %v1071 = vld [vmem:[#allocation8 + $0xda0] sm:$0xff]
        %v1072 = vld [vmem:[#allocation8 + $0xda8] sm:$0xff]
        %v1073 = vld [vmem:[#allocation8 + $0xdb0] sm:$0xff]
        %v1074 = vld [vmem:[#allocation8 + $0xdb8] sm:$0xff]
        %v1075 = vld [vmem:[#allocation8 + $0xdc0] sm:$0xff]
        %v1076 = vld [vmem:[#allocation8 + $0xdc8] sm:$0xff]
        %v1077 = vld [vmem:[#allocation8 + $0xdd0] sm:$0xff]
        %v1078 = vld [vmem:[#allocation8 + $0xdd8] sm:$0xff]
        %v1079 = vld [vmem:[#allocation8 + $0xde0] sm:$0xff]
        %v1080 = vld [vmem:[#allocation8 + $0xde8] sm:$0xff]
        %v1081 = vld [vmem:[#allocation8 + $0xdf0] sm:$0xff]
        %v1082 = vld [vmem:[#allocation8 + $0xdf8] sm:$0xff]
        %v1083 = vld [vmem:[#allocation8 + $0xe00] sm:$0xff]
        %v1084 = vld [vmem:[#allocation8 + $0xe08] sm:$0xff]
        %v1085 = vld [vmem:[#allocation8 + $0xe10] sm:$0xff]
        %v1086 = vld [vmem:[#allocation8 + $0xe18] sm:$0xff]
        %v1087 = vld [vmem:[#allocation8 + $0xe20] sm:$0xff]
        %v1088 = vld [vmem:[#allocation8 + $0xe28] sm:$0xff]
        %v1089 = vld [vmem:[#allocation8 + $0xe30] sm:$0xff]
        %v1090 = vld [vmem:[#allocation8 + $0xe38] sm:$0xff]
        %v1091 = vld [vmem:[#allocation8 + $0xe40] sm:$0xff]
        %v1092 = vld [vmem:[#allocation8 + $0xe48] sm:$0xff]
        %v1093 = vld [vmem:[#allocation8 + $0xe50] sm:$0xff]
        %v1094 = vld [vmem:[#allocation8 + $0xe58] sm:$0xff]
        %v1095 = vld [vmem:[#allocation8 + $0xe60] sm:$0xff]
        %v1096 = vld [vmem:[#allocation8 + $0xe68] sm:$0xff]
        %v1097 = vld [vmem:[#allocation8 + $0xe70] sm:$0xff]
        %v1098 = vld [vmem:[#allocation8 + $0xe78] sm:$0xff]
        %v1099 = vld [vmem:[#allocation8 + $0xe80] sm:$0xff]
        %v1100 = vld [vmem:[#allocation8 + $0xe88] sm:$0xff]
        %v1101 = vld [vmem:[#allocation8 + $0xe90] sm:$0xff]
        %v1102 = vld [vmem:[#allocation8 + $0xe98] sm:$0xff]
        %v1103 = vld [vmem:[#allocation8 + $0xea0] sm:$0xff]
        %v1104 = vld [vmem:[#allocation8 + $0xea8] sm:$0xff]
        %v1105 = vld [vmem:[#allocation8 + $0xeb0] sm:$0xff]
        %v1106 = vld [vmem:[#allocation8 + $0xeb8] sm:$0xff]
        %v1107 = vld [vmem:[#allocation8 + $0xec0] sm:$0xff]
        %v1108 = vld [vmem:[#allocation8 + $0xec8] sm:$0xff]
        %v1109 = vld [vmem:[#allocation8 + $0xed0] sm:$0xff]
        %v1110 = vld [vmem:[#allocation8 + $0xed8] sm:$0xff]
        %v1111 = vld [vmem:[#allocation8 + $0xee0] sm:$0xff]
        %v1112 = vld [vmem:[#allocation8 + $0xee8] sm:$0xff]
        %v1113 = vld [vmem:[#allocation8 + $0xef0] sm:$0xff]
        %v1114 = vld [vmem:[#allocation8 + $0xef8] sm:$0xff]
        %v1115 = vld [vmem:[#allocation8 + $0xf00] sm:$0xff]
        %v1116 = vld [vmem:[#allocation8 + $0xf08] sm:$0xff]
        %v1117 = vld [vmem:[#allocation8 + $0xf10] sm:$0xff]
        %v1118 = vld [vmem:[#allocation8 + $0xf18] sm:$0xff]
        %v1119 = vld [vmem:[#allocation8 + $0xf20] sm:$0xff]
        %v1120 = vld [vmem:[#allocation8 + $0xf28] sm:$0xff]
        %v1121 = vld [vmem:[#allocation8 + $0xf30] sm:$0xff]
        %v1122 = vld [vmem:[#allocation8 + $0xf38] sm:$0xff]
        %v1123 = vld [vmem:[#allocation8 + $0xf40] sm:$0xff]
        %v1124 = vld [vmem:[#allocation8 + $0xf48] sm:$0xff]
        %v1125 = vld [vmem:[#allocation8 + $0xf50] sm:$0xff]
        %v1126 = vld [vmem:[#allocation8 + $0xf58] sm:$0xff]
        %v1127 = vld [vmem:[#allocation8 + $0xf60] sm:$0xff]
        %v1128 = vld [vmem:[#allocation8 + $0xf68] sm:$0xff]
        %v1129 = vld [vmem:[#allocation8 + $0xf70] sm:$0xff]
        %v1130 = vld [vmem:[#allocation8 + $0xf78] sm:$0xff]
        %v1131 = vld [vmem:[#allocation8 + $0xf80] sm:$0xff]
        %v1132 = vld [vmem:[#allocation8 + $0xf88] sm:$0xff]
        %v1133 = vld [vmem:[#allocation8 + $0xf90] sm:$0xff]
        %v1134 = vld [vmem:[#allocation8 + $0xf98] sm:$0xff]
        %v1135 = vld [vmem:[#allocation8 + $0xfa0] sm:$0xff]
        %v1136 = vld [vmem:[#allocation8 + $0xfa8] sm:$0xff]
        %v1137 = vld [vmem:[#allocation8 + $0xfb0] sm:$0xff]
        %v1138 = vld [vmem:[#allocation8 + $0xfb8] sm:$0xff]
        %v1139 = vld [vmem:[#allocation8 + $0xfc0] sm:$0xff]
        %v1140 = vld [vmem:[#allocation8 + $0xfc8] sm:$0xff]
        %v1141 = vld [vmem:[#allocation8 + $0xfd0] sm:$0xff]
        %v1142 = vld [vmem:[#allocation8 + $0xfd8] sm:$0xff]
        %v1143 = vld [vmem:[#allocation8 + $0xfe0] sm:$0xff]
        %v1144 = vld [vmem:[#allocation8 + $0xfe8] sm:$0xff]
        %v1145 = vld [vmem:[#allocation8 + $0xff0] sm:$0xff]
        %v1146 = vld [vmem:[#allocation8 + $0xff8] sm:$0xff]
        %v1147 = vld [vmem:[%s4] sm:$0xff]
        %1149 = vset.pattern.permute.xlu0 0
        %1150 = vperm.xlu0 %1149, %v1147
        %v1151 = vpop.permute.xlu0 %1150
        %1153 = vmatprep.subr.mxu0 %v756
        %1154 = vmatpush1.msra.mxu0 %v755
        %1155 = vmatprep.subr.mxu0 %v748
        %1156 = vmatpush1.msra.mxu0 %v747
        %1157 = vmatprep.subr.mxu0 %v740
        %1158 = vmatpush1.msra.mxu0 %v739
        %1159 = vmatprep.subr.mxu0 %v732
        %1160 = vmatpush1.msra.mxu0 %v731
        %1161 = vmatprep.subr.mxu0 %v724
        %1162 = vmatpush1.msra.mxu0 %v723
        %1163 = vmatprep.subr.mxu0 %v716
        %1164 = vmatpush1.msra.mxu0 %v715
        %1165 = vmatprep.subr.mxu0 %v708
        %1166 = vmatpush1.msra.mxu0 %v707
        %1167 = vmatprep.subr.mxu0 %v700
        %1168 = vmatpush1.msra.mxu0 %v699
        %1169 = vmatprep.subr.mxu0 %v692
        %1170 = vmatpush1.msra.mxu0 %v691
        %1171 = vmatprep.subr.mxu0 %v684
        %1172 = vmatpush1.msra.mxu0 %v683
        %1173 = vmatprep.subr.mxu0 %v676
        %1174 = vmatpush1.msra.mxu0 %v675
        %1175 = vmatprep.subr.mxu0 %v668
        %1176 = vmatpush1.msra.mxu0 %v667
        %1177 = vmatprep.subr.mxu0 %v660
        %1178 = vmatpush1.msra.mxu0 %v659
        %1179 = vmatprep.subr.mxu0 %v652
        %1180 = vmatpush1.msra.mxu0 %v651
        %1181 = vmatprep.subr.mxu0 %v644
        %1182 = vmatpush1.msra.mxu0 %v643
        %1183 = vmatprep.subr.mxu0 %v636
        %1184 = vmatpush1.msra.mxu0 %v635
        %1185 = vmatprep.subr.mxu0 %v884
        %1186 = vmatpush2.msra.mxu0 %v883
        %1187 = vmatprep.subr.mxu0 %v876
        %1188 = vmatpush2.msra.mxu0 %v875
        %1189 = vmatprep.subr.mxu0 %v868
        %1190 = vmatpush2.msra.mxu0 %v867
        %1191 = vmatprep.subr.mxu0 %v860
        %1192 = vmatpush2.msra.mxu0 %v859
        %1193 = vmatprep.subr.mxu0 %v852
        %1194 = vmatpush2.msra.mxu0 %v851
        %1195 = vmatprep.subr.mxu0 %v844
        %1196 = vmatpush2.msra.mxu0 %v843
        %1197 = vmatprep.subr.mxu0 %v836
        %1198 = vmatpush2.msra.mxu0 %v835
        %1199 = vmatprep.subr.mxu0 %v828
        %1200 = vmatpush2.msra.mxu0 %v827
        %1201 = vmatprep.subr.mxu0 %v820
        %1202 = vmatpush2.msra.mxu0 %v819
        %1203 = vmatprep.subr.mxu0 %v812
        %1204 = vmatpush2.msra.mxu0 %v811
        %1205 = vmatprep.subr.mxu0 %v804
        %1206 = vmatpush2.msra.mxu0 %v803
        %1207 = vmatprep.subr.mxu0 %v796
        %1208 = vmatpush2.msra.mxu0 %v795
        %1209 = vmatprep.subr.mxu0 %v788
        %1210 = vmatpush2.msra.mxu0 %v787
        %1211 = vmatprep.subr.mxu0 %v780
        %1212 = vmatpush2.msra.mxu0 %v779
        %1213 = vmatprep.subr.mxu0 %v772
        %1214 = vmatpush2.msra.mxu0 %v771
        %1215 = vmatprep.subr.mxu0 %v764
        %1216 = vmatpush2.msra.mxu0 %v763
        %1217 = vmatprep.mubr.f32.mxu0 %v562
        %1218 = vmatmul.mubr.f32.gmra.mxu0 %v560
        %v1219 = vpop.f32.mrf.mxu0
        %v1220 = vadd.f32 %v1151, %v1219
        %v1221 = vpop.f32.mrf.mxu0
        %v1222 = vadd.f32 %v1151, %v1221
        %1223 = vdwg.mxu0
        %1224 = vmatprep.subr.mxu0 %v1012
        %1225 = vmatpush1.msra.mxu0 %v1011
        %1226 = vmatprep.subr.mxu0 %v1004
        %1227 = vmatpush1.msra.mxu0 %v1003
        %1228 = vmatprep.subr.mxu0 %v996
        %1229 = vmatpush1.msra.mxu0 %v995
        %1230 = vmatprep.subr.mxu0 %v988
        %1231 = vmatpush1.msra.mxu0 %v987
        %1232 = vmatprep.subr.mxu0 %v980
        %1233 = vmatpush1.msra.mxu0 %v979
        %1234 = vmatprep.subr.mxu0 %v972
        %1235 = vmatpush1.msra.mxu0 %v971
        %1236 = vmatprep.subr.mxu0 %v964
        %1237 = vmatpush1.msra.mxu0 %v963
        %1238 = vmatprep.subr.mxu0 %v956
        %1239 = vmatpush1.msra.mxu0 %v955
        %1240 = vmatprep.subr.mxu0 %v948
        %1241 = vmatpush1.msra.mxu0 %v947
        %1242 = vmatprep.subr.mxu0 %v940
        %1243 = vmatpush1.msra.mxu0 %v939
        %1244 = vmatprep.subr.mxu0 %v932
        %1245 = vmatpush1.msra.mxu0 %v931
        %1246 = vmatprep.subr.mxu0 %v924
        %1247 = vmatpush1.msra.mxu0 %v923
        %1248 = vmatprep.subr.mxu0 %v916
        %1249 = vmatpush1.msra.mxu0 %v915
        %1250 = vmatprep.subr.mxu0 %v908
        %1251 = vmatpush1.msra.mxu0 %v907
        %1252 = vmatprep.subr.mxu0 %v900
        %1253 = vmatpush1.msra.mxu0 %v899
        %1254 = vmatprep.subr.mxu0 %v892
        %1255 = vmatpush1.msra.mxu0 %v891
        %1256 = vmatprep.subr.mxu0 %v1140
        %1257 = vmatpush2.msra.mxu0 %v1139
        %1258 = vmatprep.subr.mxu0 %v1132
        %1259 = vmatpush2.msra.mxu0 %v1131
        %1260 = vmatprep.subr.mxu0 %v1124
        %1261 = vmatpush2.msra.mxu0 %v1123
        %1262 = vmatprep.subr.mxu0 %v1116
        %1263 = vmatpush2.msra.mxu0 %v1115
        %1264 = vmatprep.subr.mxu0 %v1108
        %1265 = vmatpush2.msra.mxu0 %v1107
        %1266 = vmatprep.subr.mxu0 %v1100
        %1267 = vmatpush2.msra.mxu0 %v1099
        %1268 = vmatprep.subr.mxu0 %v1092
        %1269 = vmatpush2.msra.mxu0 %v1091
        %1270 = vmatprep.subr.mxu0 %v1084
        %1271 = vmatpush2.msra.mxu0 %v1083
        %1272 = vmatprep.subr.mxu0 %v1076
        %1273 = vmatpush2.msra.mxu0 %v1075
        %1274 = vmatprep.subr.mxu0 %v1068
        %1275 = vmatpush2.msra.mxu0 %v1067
        %1276 = vmatprep.subr.mxu0 %v1060
        %1277 = vmatpush2.msra.mxu0 %v1059
        %1278 = vmatprep.subr.mxu0 %v1052
        %1279 = vmatpush2.msra.mxu0 %v1051
        %1280 = vmatprep.subr.mxu0 %v1044
        %1281 = vmatpush2.msra.mxu0 %v1043
        %1282 = vmatprep.subr.mxu0 %v1036
        %1283 = vmatpush2.msra.mxu0 %v1035
        %1284 = vmatprep.subr.mxu0 %v1028
        %1285 = vmatpush2.msra.mxu0 %v1027
        %1286 = vmatprep.subr.mxu0 %v1020
        %1287 = vmatpush2.msra.mxu0 %v1019
        %1288 = vmatprep.mubr.f32.mxu0 %v633
        %1289 = vmatmul.mubr.f32.gmra.mxu0 %v631
        %v1290 = vpop.f32.mrf.mxu0
        %v1291 = vadd.f32 %v1220, %v1290
        %v1292 = vpop.f32.mrf.mxu0
        %v1293 = vadd.f32 %v1222, %v1292
        %1294 = vdwg.mxu0
        %1295 = vmatprep.subr.mxu0 %v758
        %1296 = vmatpush1.msra.mxu0 %v757
        %1297 = vmatprep.subr.mxu0 %v750
        %1298 = vmatpush1.msra.mxu0 %v749
        %1299 = vmatprep.subr.mxu0 %v742
        %1300 = vmatpush1.msra.mxu0 %v741
        %1301 = vmatprep.subr.mxu0 %v734
        %1302 = vmatpush1.msra.mxu0 %v733
        %1303 = vmatprep.subr.mxu0 %v726
        %1304 = vmatpush1.msra.mxu0 %v725
        %1305 = vmatprep.subr.mxu0 %v718
        %1306 = vmatpush1.msra.mxu0 %v717
        %1307 = vmatprep.subr.mxu0 %v710
        %1308 = vmatpush1.msra.mxu0 %v709
        %1309 = vmatprep.subr.mxu0 %v702
        %1310 = vmatpush1.msra.mxu0 %v701
        %1311 = vmatprep.subr.mxu0 %v694
        %1312 = vmatpush1.msra.mxu0 %v693
        %1313 = vmatprep.subr.mxu0 %v686
        %1314 = vmatpush1.msra.mxu0 %v685
        %1315 = vmatprep.subr.mxu0 %v678
        %1316 = vmatpush1.msra.mxu0 %v677
        %1317 = vmatprep.subr.mxu0 %v670
        %1318 = vmatpush1.msra.mxu0 %v669
        %1319 = vmatprep.subr.mxu0 %v662
        %1320 = vmatpush1.msra.mxu0 %v661
        %1321 = vmatprep.subr.mxu0 %v654
        %1322 = vmatpush1.msra.mxu0 %v653
        %1323 = vmatprep.subr.mxu0 %v646
        %1324 = vmatpush1.msra.mxu0 %v645
        %1325 = vmatprep.subr.mxu0 %v638
        %1326 = vmatpush1.msra.mxu0 %v637
        %1327 = vmatprep.subr.mxu0 %v886
        %1328 = vmatpush2.msra.mxu0 %v885
        %1329 = vmatprep.subr.mxu0 %v878
        %1330 = vmatpush2.msra.mxu0 %v877
        %1331 = vmatprep.subr.mxu0 %v870
        %1332 = vmatpush2.msra.mxu0 %v869
        %1333 = vmatprep.subr.mxu0 %v862
        %1334 = vmatpush2.msra.mxu0 %v861
        %1335 = vmatprep.subr.mxu0 %v854
        %1336 = vmatpush2.msra.mxu0 %v853
        %1337 = vmatprep.subr.mxu0 %v846
        %1338 = vmatpush2.msra.mxu0 %v845
        %1339 = vmatprep.subr.mxu0 %v838
        %1340 = vmatpush2.msra.mxu0 %v837
        %1341 = vmatprep.subr.mxu0 %v830
        %1342 = vmatpush2.msra.mxu0 %v829
        %1343 = vmatprep.subr.mxu0 %v822
        %1344 = vmatpush2.msra.mxu0 %v821
        %1345 = vmatprep.subr.mxu0 %v814
        %1346 = vmatpush2.msra.mxu0 %v813
        %1347 = vmatprep.subr.mxu0 %v806
        %1348 = vmatpush2.msra.mxu0 %v805
        %1349 = vmatprep.subr.mxu0 %v798
        %1350 = vmatpush2.msra.mxu0 %v797
        %1351 = vmatprep.subr.mxu0 %v790
        %1352 = vmatpush2.msra.mxu0 %v789
        %1353 = vmatprep.subr.mxu0 %v782
        %1354 = vmatpush2.msra.mxu0 %v781
        %1355 = vmatprep.subr.mxu0 %v774
        %1356 = vmatpush2.msra.mxu0 %v773
        %1357 = vmatprep.subr.mxu0 %v766
        %1358 = vmatpush2.msra.mxu0 %v765
        %1359 = vmatprep.mubr.f32.mxu0 %v562
        %1360 = vmatmul.mubr.f32.gmra.mxu0 %v560
        %v1361 = vpop.f32.mrf.mxu0
        %v1362 = vadd.f32 %v1151, %v1361
        %v1363 = vpop.f32.mrf.mxu0
        %v1364 = vadd.f32 %v1151, %v1363
        %1365 = vdwg.mxu0
        %1366 = vmatprep.subr.mxu0 %v1014
        %1367 = vmatpush1.msra.mxu0 %v1013
        %1368 = vmatprep.subr.mxu0 %v1006
        %1369 = vmatpush1.msra.mxu0 %v1005
        %1370 = vmatprep.subr.mxu0 %v998
        %1371 = vmatpush1.msra.mxu0 %v997
        %1372 = vmatprep.subr.mxu0 %v990
        %1373 = vmatpush1.msra.mxu0 %v989
        %1374 = vmatprep.subr.mxu0 %v982
        %1375 = vmatpush1.msra.mxu0 %v981
        %1376 = vmatprep.subr.mxu0 %v974
        %1377 = vmatpush1.msra.mxu0 %v973
        %1378 = vmatprep.subr.mxu0 %v966
        %1379 = vmatpush1.msra.mxu0 %v965
        %1380 = vmatprep.subr.mxu0 %v958
        %1381 = vmatpush1.msra.mxu0 %v957
        %1382 = vmatprep.subr.mxu0 %v950
        %1383 = vmatpush1.msra.mxu0 %v949
        %1384 = vmatprep.subr.mxu0 %v942
        %1385 = vmatpush1.msra.mxu0 %v941
        %1386 = vmatprep.subr.mxu0 %v934
        %1387 = vmatpush1.msra.mxu0 %v933
        %1388 = vmatprep.subr.mxu0 %v926
        %1389 = vmatpush1.msra.mxu0 %v925
        %1390 = vmatprep.subr.mxu0 %v918
        %1391 = vmatpush1.msra.mxu0 %v917
        %1392 = vmatprep.subr.mxu0 %v910
        %1393 = vmatpush1.msra.mxu0 %v909
        %1394 = vmatprep.subr.mxu0 %v902
        %1395 = vmatpush1.msra.mxu0 %v901
        %1396 = vmatprep.subr.mxu0 %v894
        %1397 = vmatpush1.msra.mxu0 %v893
        %1398 = vmatprep.subr.mxu0 %v1142
        %1399 = vmatpush2.msra.mxu0 %v1141
        %1400 = vmatprep.subr.mxu0 %v1134
        %1401 = vmatpush2.msra.mxu0 %v1133
        %1402 = vmatprep.subr.mxu0 %v1126
        %1403 = vmatpush2.msra.mxu0 %v1125
        %1404 = vmatprep.subr.mxu0 %v1118
        %1405 = vmatpush2.msra.mxu0 %v1117
        %1406 = vmatprep.subr.mxu0 %v1110
        %1407 = vmatpush2.msra.mxu0 %v1109
        %1408 = vmatprep.subr.mxu0 %v1102
        %1409 = vmatpush2.msra.mxu0 %v1101
        %1410 = vmatprep.subr.mxu0 %v1094
        %1411 = vmatpush2.msra.mxu0 %v1093
        %1412 = vmatprep.subr.mxu0 %v1086
        %1413 = vmatpush2.msra.mxu0 %v1085
        %1414 = vmatprep.subr.mxu0 %v1078
        %1415 = vmatpush2.msra.mxu0 %v1077
        %1416 = vmatprep.subr.mxu0 %v1070
        %1417 = vmatpush2.msra.mxu0 %v1069
        %1418 = vmatprep.subr.mxu0 %v1062
        %1419 = vmatpush2.msra.mxu0 %v1061
        %1420 = vmatprep.subr.mxu0 %v1054
        %1421 = vmatpush2.msra.mxu0 %v1053
        %1422 = vmatprep.subr.mxu0 %v1046
        %1423 = vmatpush2.msra.mxu0 %v1045
        %1424 = vmatprep.subr.mxu0 %v1038
        %1425 = vmatpush2.msra.mxu0 %v1037
        %1426 = vmatprep.subr.mxu0 %v1030
        %1427 = vmatpush2.msra.mxu0 %v1029
        %1428 = vmatprep.subr.mxu0 %v1022
        %1429 = vmatpush2.msra.mxu0 %v1021
        %1430 = vmatprep.mubr.f32.mxu0 %v633
        %1431 = vmatmul.mubr.f32.gmra.mxu0 %v631
        %v1432 = vpop.f32.mrf.mxu0
        %v1433 = vadd.f32 %v1362, %v1432
        %v1434 = vpop.f32.mrf.mxu0
        %v1435 = vadd.f32 %v1364, %v1434
        %1436 = vdwg.mxu0
        %1437 = vmatprep.subr.mxu0 %v760
        %1438 = vmatpush1.msra.mxu0 %v759
        %1439 = vmatprep.subr.mxu0 %v752
        %1440 = vmatpush1.msra.mxu0 %v751
        %1441 = vmatprep.subr.mxu0 %v744
        %1442 = vmatpush1.msra.mxu0 %v743
        %1443 = vmatprep.subr.mxu0 %v736
        %1444 = vmatpush1.msra.mxu0 %v735
        %1445 = vmatprep.subr.mxu0 %v728
        %1446 = vmatpush1.msra.mxu0 %v727
        %1447 = vmatprep.subr.mxu0 %v720
        %1448 = vmatpush1.msra.mxu0 %v719
        %1449 = vmatprep.subr.mxu0 %v712
        %1450 = vmatpush1.msra.mxu0 %v711
        %1451 = vmatprep.subr.mxu0 %v704
        %1452 = vmatpush1.msra.mxu0 %v703
        %1453 = vmatprep.subr.mxu0 %v696
        %1454 = vmatpush1.msra.mxu0 %v695
        %1455 = vmatprep.subr.mxu0 %v688
        %1456 = vmatpush1.msra.mxu0 %v687
        %1457 = vmatprep.subr.mxu0 %v680
        %1458 = vmatpush1.msra.mxu0 %v679
        %1459 = vmatprep.subr.mxu0 %v672
        %1460 = vmatpush1.msra.mxu0 %v671
        %1461 = vmatprep.subr.mxu0 %v664
        %1462 = vmatpush1.msra.mxu0 %v663
        %1463 = vmatprep.subr.mxu0 %v656
        %1464 = vmatpush1.msra.mxu0 %v655
        %1465 = vmatprep.subr.mxu0 %v648
        %1466 = vmatpush1.msra.mxu0 %v647
        %1467 = vmatprep.subr.mxu0 %v640
        %1468 = vmatpush1.msra.mxu0 %v639
        %1469 = vmatprep.subr.mxu0 %v888
        %1470 = vmatpush2.msra.mxu0 %v887
        %1471 = vmatprep.subr.mxu0 %v880
        %1472 = vmatpush2.msra.mxu0 %v879
        %1473 = vmatprep.subr.mxu0 %v872
        %1474 = vmatpush2.msra.mxu0 %v871
        %1475 = vmatprep.subr.mxu0 %v864
        %1476 = vmatpush2.msra.mxu0 %v863
        %1477 = vmatprep.subr.mxu0 %v856
        %1478 = vmatpush2.msra.mxu0 %v855
        %1479 = vmatprep.subr.mxu0 %v848
        %1480 = vmatpush2.msra.mxu0 %v847
        %1481 = vmatprep.subr.mxu0 %v840
        %1482 = vmatpush2.msra.mxu0 %v839
        %1483 = vmatprep.subr.mxu0 %v832
        %1484 = vmatpush2.msra.mxu0 %v831
        %1485 = vmatprep.subr.mxu0 %v824
        %1486 = vmatpush2.msra.mxu0 %v823
        %1487 = vmatprep.subr.mxu0 %v816
        %1488 = vmatpush2.msra.mxu0 %v815
        %1489 = vmatprep.subr.mxu0 %v808
        %1490 = vmatpush2.msra.mxu0 %v807
        %1491 = vmatprep.subr.mxu0 %v800
        %1492 = vmatpush2.msra.mxu0 %v799
        %1493 = vmatprep.subr.mxu0 %v792
        %1494 = vmatpush2.msra.mxu0 %v791
        %1495 = vmatprep.subr.mxu0 %v784
        %1496 = vmatpush2.msra.mxu0 %v783
        %1497 = vmatprep.subr.mxu0 %v776
        %1498 = vmatpush2.msra.mxu0 %v775
        %1499 = vmatprep.subr.mxu0 %v768
        %1500 = vmatpush2.msra.mxu0 %v767
        %1501 = vmatprep.mubr.f32.mxu0 %v562
        %1502 = vmatmul.mubr.f32.gmra.mxu0 %v560
        %v1503 = vpop.f32.mrf.mxu0
        %v1504 = vadd.f32 %v1151, %v1503
        %v1505 = vpop.f32.mrf.mxu0
        %v1506 = vadd.f32 %v1151, %v1505
        %1507 = vdwg.mxu0
        %1508 = vmatprep.subr.mxu0 %v1016
        %1509 = vmatpush1.msra.mxu0 %v1015
        %1510 = vmatprep.subr.mxu0 %v1008
        %1511 = vmatpush1.msra.mxu0 %v1007
        %1512 = vmatprep.subr.mxu0 %v1000
        %1513 = vmatpush1.msra.mxu0 %v999
        %1514 = vmatprep.subr.mxu0 %v992
        %1515 = vmatpush1.msra.mxu0 %v991
        %1516 = vmatprep.subr.mxu0 %v984
        %1517 = vmatpush1.msra.mxu0 %v983
        %1518 = vmatprep.subr.mxu0 %v976
        %1519 = vmatpush1.msra.mxu0 %v975
        %1520 = vmatprep.subr.mxu0 %v968
        %1521 = vmatpush1.msra.mxu0 %v967
        %1522 = vmatprep.subr.mxu0 %v960
        %1523 = vmatpush1.msra.mxu0 %v959
        %1524 = vmatprep.subr.mxu0 %v952
        %1525 = vmatpush1.msra.mxu0 %v951
        %1526 = vmatprep.subr.mxu0 %v944
        %1527 = vmatpush1.msra.mxu0 %v943
        %1528 = vmatprep.subr.mxu0 %v936
        %1529 = vmatpush1.msra.mxu0 %v935
        %1530 = vmatprep.subr.mxu0 %v928
        %1531 = vmatpush1.msra.mxu0 %v927
        %1532 = vmatprep.subr.mxu0 %v920
        %1533 = vmatpush1.msra.mxu0 %v919
        %1534 = vmatprep.subr.mxu0 %v912
        %1535 = vmatpush1.msra.mxu0 %v911
        %1536 = vmatprep.subr.mxu0 %v904
        %1537 = vmatpush1.msra.mxu0 %v903
        %1538 = vmatprep.subr.mxu0 %v896
        %1539 = vmatpush1.msra.mxu0 %v895
        %1540 = vmatprep.subr.mxu0 %v1144
        %1541 = vmatpush2.msra.mxu0 %v1143
        %1542 = vmatprep.subr.mxu0 %v1136
        %1543 = vmatpush2.msra.mxu0 %v1135
        %1544 = vmatprep.subr.mxu0 %v1128
        %1545 = vmatpush2.msra.mxu0 %v1127
        %1546 = vmatprep.subr.mxu0 %v1120
        %1547 = vmatpush2.msra.mxu0 %v1119
        %1548 = vmatprep.subr.mxu0 %v1112
        %1549 = vmatpush2.msra.mxu0 %v1111
        %1550 = vmatprep.subr.mxu0 %v1104
        %1551 = vmatpush2.msra.mxu0 %v1103
        %1552 = vmatprep.subr.mxu0 %v1096
        %1553 = vmatpush2.msra.mxu0 %v1095
        %1554 = vmatprep.subr.mxu0 %v1088
        %1555 = vmatpush2.msra.mxu0 %v1087
        %1556 = vmatprep.subr.mxu0 %v1080
        %1557 = vmatpush2.msra.mxu0 %v1079
        %1558 = vmatprep.subr.mxu0 %v1072
        %1559 = vmatpush2.msra.mxu0 %v1071
        %1560 = vmatprep.subr.mxu0 %v1064
        %1561 = vmatpush2.msra.mxu0 %v1063
        %1562 = vmatprep.subr.mxu0 %v1056
        %1563 = vmatpush2.msra.mxu0 %v1055
        %1564 = vmatprep.subr.mxu0 %v1048
        %1565 = vmatpush2.msra.mxu0 %v1047
        %1566 = vmatprep.subr.mxu0 %v1040
        %1567 = vmatpush2.msra.mxu0 %v1039
        %1568 = vmatprep.subr.mxu0 %v1032
        %1569 = vmatpush2.msra.mxu0 %v1031
        %1570 = vmatprep.subr.mxu0 %v1024
        %1571 = vmatpush2.msra.mxu0 %v1023
        %1572 = vmatprep.mubr.f32.mxu0 %v633
        %1573 = vmatmul.mubr.f32.gmra.mxu0 %v631
        %v1574 = vpop.f32.mrf.mxu0
        %v1575 = vadd.f32 %v1504, %v1574
        %v1576 = vpop.f32.mrf.mxu0
        %v1577 = vadd.f32 %v1506, %v1576
        %1578 = vdwg.mxu0
        %1579 = vmatprep.subr.mxu0 %v762
        %1580 = vmatpush1.msra.mxu0 %v761
        %1581 = vmatprep.subr.mxu0 %v754
        %1582 = vmatpush1.msra.mxu0 %v753
        %1583 = vmatprep.subr.mxu0 %v746
        %1584 = vmatpush1.msra.mxu0 %v745
        %1585 = vmatprep.subr.mxu0 %v738
        %1586 = vmatpush1.msra.mxu0 %v737
        %1587 = vmatprep.subr.mxu0 %v730
        %1588 = vmatpush1.msra.mxu0 %v729
        %1589 = vmatprep.subr.mxu0 %v722
        %1590 = vmatpush1.msra.mxu0 %v721
        %1591 = vmatprep.subr.mxu0 %v714
        %1592 = vmatpush1.msra.mxu0 %v713
        %1593 = vmatprep.subr.mxu0 %v706
        %1594 = vmatpush1.msra.mxu0 %v705
        %1595 = vmatprep.subr.mxu0 %v698
        %1596 = vmatpush1.msra.mxu0 %v697
        %1597 = vmatprep.subr.mxu0 %v690
        %1598 = vmatpush1.msra.mxu0 %v689
        %1599 = vmatprep.subr.mxu0 %v682
        %1600 = vmatpush1.msra.mxu0 %v681
        %1601 = vmatprep.subr.mxu0 %v674
        %1602 = vmatpush1.msra.mxu0 %v673
        %1603 = vmatprep.subr.mxu0 %v666
        %1604 = vmatpush1.msra.mxu0 %v665
        %1605 = vmatprep.subr.mxu0 %v658
        %1606 = vmatpush1.msra.mxu0 %v657
        %1607 = vmatprep.subr.mxu0 %v650
        %1608 = vmatpush1.msra.mxu0 %v649
        %1609 = vmatprep.subr.mxu0 %v642
        %1610 = vmatpush1.msra.mxu0 %v641
        %1611 = vmatprep.subr.mxu0 %v890
        %1612 = vmatpush2.msra.mxu0 %v889
        %1613 = vmatprep.subr.mxu0 %v882
        %1614 = vmatpush2.msra.mxu0 %v881
        %1615 = vmatprep.subr.mxu0 %v874
        %1616 = vmatpush2.msra.mxu0 %v873
        %1617 = vmatprep.subr.mxu0 %v866
        %1618 = vmatpush2.msra.mxu0 %v865
        %1619 = vmatprep.subr.mxu0 %v858
        %1620 = vmatpush2.msra.mxu0 %v857
        %1621 = vmatprep.subr.mxu0 %v850
        %1622 = vmatpush2.msra.mxu0 %v849
        %1623 = vmatprep.subr.mxu0 %v842
        %1624 = vmatpush2.msra.mxu0 %v841
        %1625 = vmatprep.subr.mxu0 %v834
        %1626 = vmatpush2.msra.mxu0 %v833
        %1627 = vmatprep.subr.mxu0 %v826
        %1628 = vmatpush2.msra.mxu0 %v825
        %1629 = vmatprep.subr.mxu0 %v818
        %1630 = vmatpush2.msra.mxu0 %v817
        %1631 = vmatprep.subr.mxu0 %v810
        %1632 = vmatpush2.msra.mxu0 %v809
        %1633 = vmatprep.subr.mxu0 %v802
        %1634 = vmatpush2.msra.mxu0 %v801
        %1635 = vmatprep.subr.mxu0 %v794
        %1636 = vmatpush2.msra.mxu0 %v793
        %1637 = vmatprep.subr.mxu0 %v786
        %1638 = vmatpush2.msra.mxu0 %v785
        %1639 = vmatprep.subr.mxu0 %v778
        %1640 = vmatpush2.msra.mxu0 %v777
        %1641 = vmatprep.subr.mxu0 %v770
        %1642 = vmatpush2.msra.mxu0 %v769
        %1643 = vmatprep.mubr.f32.mxu0 %v562
        %1644 = vmatmul.mubr.f32.gmra.mxu0 %v560
        %v1645 = vpop.f32.mrf.mxu0
        %v1646 = vadd.f32 %v1151, %v1645
        %v1647 = vpop.f32.mrf.mxu0
        %v1648 = vadd.f32 %v1151, %v1647
        %1649 = vdwg.mxu0
        %1650 = vmatprep.subr.mxu0 %v1018
        %1651 = vmatpush1.msra.mxu0 %v1017
        %1652 = vmatprep.subr.mxu0 %v1010
        %1653 = vmatpush1.msra.mxu0 %v1009
        %1654 = vmatprep.subr.mxu0 %v1002
        %1655 = vmatpush1.msra.mxu0 %v1001
        %1656 = vmatprep.subr.mxu0 %v994
        %1657 = vmatpush1.msra.mxu0 %v993
        %1658 = vmatprep.subr.mxu0 %v986
        %1659 = vmatpush1.msra.mxu0 %v985
        %1660 = vmatprep.subr.mxu0 %v978
        %1661 = vmatpush1.msra.mxu0 %v977
        %1662 = vmatprep.subr.mxu0 %v970
        %1663 = vmatpush1.msra.mxu0 %v969
        %1664 = vmatprep.subr.mxu0 %v962
        %1665 = vmatpush1.msra.mxu0 %v961
        %1666 = vmatprep.subr.mxu0 %v954
        %1667 = vmatpush1.msra.mxu0 %v953
        %1668 = vmatprep.subr.mxu0 %v946
        %1669 = vmatpush1.msra.mxu0 %v945
        %1670 = vmatprep.subr.mxu0 %v938
        %1671 = vmatpush1.msra.mxu0 %v937
        %1672 = vmatprep.subr.mxu0 %v930
        %1673 = vmatpush1.msra.mxu0 %v929
        %1674 = vmatprep.subr.mxu0 %v922
        %1675 = vmatpush1.msra.mxu0 %v921
        %1676 = vmatprep.subr.mxu0 %v914
        %1677 = vmatpush1.msra.mxu0 %v913
        %1678 = vmatprep.subr.mxu0 %v906
        %1679 = vmatpush1.msra.mxu0 %v905
        %1680 = vmatprep.subr.mxu0 %v898
        %1681 = vmatpush1.msra.mxu0 %v897
        %1682 = vmatprep.subr.mxu0 %v1146
        %1683 = vmatpush2.msra.mxu0 %v1145
        %1684 = vmatprep.subr.mxu0 %v1138
        %1685 = vmatpush2.msra.mxu0 %v1137
        %1686 = vmatprep.subr.mxu0 %v1130
        %1687 = vmatpush2.msra.mxu0 %v1129
        %1688 = vmatprep.subr.mxu0 %v1122
        %1689 = vmatpush2.msra.mxu0 %v1121
        %1690 = vmatprep.subr.mxu0 %v1114
        %1691 = vmatpush2.msra.mxu0 %v1113
        %1692 = vmatprep.subr.mxu0 %v1106
        %1693 = vmatpush2.msra.mxu0 %v1105
        %1694 = vmatprep.subr.mxu0 %v1098
        %1695 = vmatpush2.msra.mxu0 %v1097
        %1696 = vmatprep.subr.mxu0 %v1090
        %1697 = vmatpush2.msra.mxu0 %v1089
        %1698 = vmatprep.subr.mxu0 %v1082
        %1699 = vmatpush2.msra.mxu0 %v1081
        %1700 = vmatprep.subr.mxu0 %v1074
        %1701 = vmatpush2.msra.mxu0 %v1073
        %1702 = vmatprep.subr.mxu0 %v1066
        %1703 = vmatpush2.msra.mxu0 %v1065
        %1704 = vmatprep.subr.mxu0 %v1058
        %1705 = vmatpush2.msra.mxu0 %v1057
        %1706 = vmatprep.subr.mxu0 %v1050
        %1707 = vmatpush2.msra.mxu0 %v1049
        %1708 = vmatprep.subr.mxu0 %v1042
        %1709 = vmatpush2.msra.mxu0 %v1041
        %1710 = vmatprep.subr.mxu0 %v1034
        %1711 = vmatpush2.msra.mxu0 %v1033
        %1712 = vmatprep.subr.mxu0 %v1026
        %1713 = vmatpush2.msra.mxu0 %v1025
        %1714 = vmatprep.mubr.f32.mxu0 %v633
        %1715 = vmatmul.mubr.f32.gmra.mxu0 %v631
        %v1716 = vpop.f32.mrf.mxu0
        %v1717 = vadd.f32 %v1646, %v1716
        %v1718 = vpop.f32.mrf.mxu0
        %v1719 = vadd.f32 %v1648, %v1718
        %1720 = vdwg.mxu0
        %1721 = vst [vmem:[%s284] sm:$0xff] %v1291
        %1722 = vst [vmem:[%s284 + $0x8] sm:$0xff] %v1293
        %1723 = vst [vmem:[%s284 + $0x10] sm:$0xff] %v1433
        %1724 = vst [vmem:[%s284 + $0x18] sm:$0xff] %v1435
        %1725 = vst [vmem:[%s284 + $0x20] sm:$0xff] %v1575
        %1726 = vst [vmem:[%s284 + $0x28] sm:$0xff] %v1577
        %1727 = vst [vmem:[%s284 + $0x30] sm:$0xff] %v1717
        %1728 = vst [vmem:[%s284 + $0x38] sm:$0xff] %v1719
        %s1729 = sand.u32 %s142, 1
        %s1730 = scalar_lea.sflag [#allocation4], %s1729
        %s1731 = sand.u32 %s142, 1
        %s1732 = smul.addr %s1731, 64
        %s1733 = scalar_lea.vmem [#allocation10], %s1732
        // Predicated region
        $region57: #{tpu_custom_call.1} parent=39 // pred_check
          %p1734 = pneg %p152
        $region58: #{tpu_custom_call.1} parent=39 // pred_check_branch
          %1736 = sbr.rel (%p1734) target = $region60
        $region59: #{tpu_custom_call.1} parent=39 // pred_region
          %s1738 = ssub.s32 1024, 1024
          %1739 = vsyncadd %s1730, %s1738
          %s1740 = smul.addr %s24, 8
          %s1741 = smul.addr %s1740, 128
          %s1742 = scalar_lea.hbm %s5, %s1741
          %s1744 = sshll.u32 %s1733, 4
          %s1745 = int_to_ptr.vmem [resolvable:$true] %s1744
          %1747 = dma.vmem_to_hbm [thread:$0]  %s1745, 1024, %s1742, %s1730
        $region60: #{tpu_custom_call.1} parent=39 // pred_fallthru
          _
      $region40: #{tpu_custom_call.1} parent=5 // pred_fallthru
        _
      %p1748 = scmp.le.s32.totalorder 2, %s19
      // Predicated region
      $region61: #{tpu_custom_call.1} parent=5 // pred_check
        %p1749 = pneg %p1748
      $region62: #{tpu_custom_call.1} parent=5 // pred_check_branch
        %1751 = sbr.rel (%p1749) target = $region64
      $region63: #{tpu_custom_call.1} parent=5 // pred_region
        %s1752 = ssub.s32 %s19, 2
        // Predicated region
        $region65: #{tpu_custom_call.1} parent=63 // pred_check
          %p1753 = pneg %p158
        $region66: #{tpu_custom_call.1} parent=63 // pred_check_branch
          %1755 = sbr.rel (%p1753) target = $region68
        $region67: #{tpu_custom_call.1} parent=63 // pred_region
          %s1756 = sand.u32 %s143, 1
          %s1757 = scalar_lea.sflag [#allocation4], %s1756
          %s1758 = sand.u32 %s143, 1
          %s1759 = smul.addr %s1758, 64
          %s1760 = scalar_lea.vmem [#allocation10], %s1759
          %1761 = dma.done %s1757, 1024
        $region68: #{tpu_custom_call.1} parent=63 // pred_fallthru
          _
      $region64: #{tpu_custom_call.1} parent=5 // pred_fallthru
        _
    $region6: #{tpu_custom_call.1} parent=1 // loop_footer
      %s23 = sadd.s32 1, %s19
    $region7: #{tpu_custom_call.1} parent=1 // loop_footer_branch
      %18 = sbr.rel target = $region3
    $region8: #{tpu_custom_call.1} parent=1 // loop_exit
      _
    %1762 = vsyncpa [#allocation3], 1
    %s1763 = scalar_lea.sflag [#allocation3], 1
    %1764 = vsyncpa %s1763, 1
    %1765 = vsyncpa [#allocation6], 1
    %1766 = vsyncpa [#allocation9], 1
    %1767 = vsyncpa [#allocation4], 1
    %s1768 = scalar_lea.sflag [#allocation4], 1
    %1769 = vsyncpa %s1768, 1

</llo_original>
